<compile_context>
chip_gen: v5e
topology: v5e:2x2
jax: 0.10.0
libtpu: 0.0.40
codegen_flags: <defaults>
</compile_context>

<pallas_src>
import numpy as np
import jax
import jax.numpy as jnp
from jax.experimental import pallas as pl
from jax.experimental.pallas import tpu as pltpu


# -----------------------------------------------------------------------------
# Static operator matrices (built once in numpy; they encode pooling / interp)
# -----------------------------------------------------------------------------
def _adaptive_pool_matrix(out_size: int, in_size: int) -> np.ndarray:
    """Row-stochastic M (out_size, in_size) s.t. M @ v == AdaptiveAvgPool1d(v)."""
    m = np.zeros((out_size, in_size), np.float32)
    for i in range(out_size):
        s = (i * in_size) // out_size
        e = -(-((i + 1) * in_size) // out_size)  # ceil
        m[i, s:e] = 1.0 / (e - s)
    return m


def _bilinear_matrix(out_size: int, in_size: int) -> np.ndarray:
    """A (out_size, in_size) implementing 1-D bilinear upsample, align_corners=True."""
    m = np.zeros((out_size, in_size), np.float32)
    for o in range(out_size):
        src = o * (in_size - 1) / (out_size - 1) if out_size > 1 else 0.0
        i0 = min(int(np.floor(src)), in_size - 1)
        i1 = min(i0 + 1, in_size - 1)
        w = src - i0
        m[o, i0] += 1.0 - w
        m[o, i1] += w
    return m


# -----------------------------------------------------------------------------
# Fused Pallas kernel: all pyramid branches in 3 matmuls, one batch elem / step
# -----------------------------------------------------------------------------
def _make_psp_kernel(c_pass: int):
    def kernel(x_ref, pmatT_ref, wfull_ref, biasmask_ref, umatT_ref, o_ref):
        # x_ref:        (1, C, H*W)               current batch element
        # pmatT_ref:    (H*W, PP)        bf16     merged pooling operators
        # wfull_ref:    (nb*Co, C)       bf16     BN-folded 1x1-conv weights
        # biasmask_ref: (nb*Co, PP)      f32      bias inside own branch cols, -1e30 else
        # umatT_ref:    (PP, Ho*Wo)      bf16     merged bilinear-upsample operators
        # o_ref:        (1, c_pass + nb*Co, Ho*Wo)
        x = x_ref[0]                                                   # (C, H*W)
        pooled = jnp.dot(x.astype(jnp.bfloat16), pmatT_ref[...],
                         preferred_element_type=jnp.float32)           # (C, PP)
        g = jnp.dot(wfull_ref[...], pooled.astype(jnp.bfloat16),
                    preferred_element_type=jnp.float32)                # (nb*Co, PP)
        # + bias inside each branch's own columns; -1e30 elsewhere so the ReLU
        # zeroes cross-branch / padded columns (their UmatT rows are zero too).
        g = jnp.maximum(g + biasmask_ref[...], 0.0)
        up = jnp.dot(g.astype(jnp.bfloat16), umatT_ref[...],
                     preferred_element_type=jnp.float32)               # (nb*Co, Ho*Wo)
        if c_pass:
            o_ref[0, :c_pass, :] = x.astype(o_ref.dtype)               # identity pass-through
            o_ref[0, c_pass:, :] = up.astype(o_ref.dtype)
        else:
            o_ref[0] = up.astype(o_ref.dtype)
    return kernel


# -----------------------------------------------------------------------------
# Full PyramidPooling forward
# -----------------------------------------------------------------------------
def pyramid_pooling_forward(x_nchw, params, pool_sizes, height, width, eps=1e-5):
    n, c, h, w = x_nchw.shape
    nb = len(pool_sizes)
    co = params[0][0].shape[0]
    nbco = nb * co
    hw, hwo = h * w, height * width
    pp_sum = sum(p * p for p in pool_sizes)
    pp_tot = max(128, ((pp_sum + 127) // 128) * 128)          # lane-pad merged PP axis
    offs = np.cumsum([0] + [p * p for p in pool_sizes])

    # --- merged, zero-padded operator tensors (host-side, once) ---
    pmatT_np = np.zeros((hw, pp_tot), np.float32)
    umatT_np = np.zeros((pp_tot, hwo), np.float32)
    for b, p in enumerate(pool_sizes):
        pm = np.kron(_adaptive_pool_matrix(p, h), _adaptive_pool_matrix(p, w))    # (p*p, H*W)
        um = np.kron(_bilinear_matrix(height, p), _bilinear_matrix(width, p))     # (Ho*Wo, p*p)
        pmatT_np[:, offs[b]:offs[b + 1]] = pm.T
        umatT_np[offs[b]:offs[b + 1], :] = um.T

    # --- fold BN (running stats) into the conv weight; bias+mask into one operand ---
    wfull_np = np.zeros((nbco, c), np.float32)
    biasmask_np = np.full((nbco, pp_tot), -1e30, np.float32)
    for b, (wk, gamma, beta, mean, var) in enumerate(params):
        wk = np.asarray(wk, np.float32).reshape(co, c)
        gamma, beta, mean, var = (np.asarray(t, np.float32) for t in (gamma, beta, mean, var))
        scale = gamma / np.sqrt(var + eps)
        shift = beta - mean * scale
        wfull_np[b * co:(b + 1) * co, :] = wk * scale[:, None]
        biasmask_np[b * co:(b + 1) * co, offs[b]:offs[b + 1]] = shift[:, None]

    pmatT = jnp.asarray(pmatT_np, jnp.bfloat16)
    wfull = jnp.asarray(wfull_np, jnp.bfloat16)
    biasmask = jnp.asarray(biasmask_np, jnp.float32)
    umatT = jnp.asarray(umatT_np, jnp.bfloat16)

    fuse = (height == h and width == w)          # identity channels share the lane dim
    c_pass = c if fuse else 0
    out_ch = c_pass + nbco
    x_flat = x_nchw.reshape(n, c, hw)            # NCHW-native: no transpose
    out_dtype = x_nchw.dtype
    kernel = _make_psp_kernel(c_pass)

    def run(single_buffer_constants):
        kw = {"pipeline_mode": pl.Buffered(1)} if single_buffer_constants else {}
        return pl.pallas_call(
            kernel,
            out_shape=jax.ShapeDtypeStruct((n, out_ch, hwo), out_dtype),
            grid=(n,),
            in_specs=[
                pl.BlockSpec((1, c, hw), lambda i: (i, 0, 0)),
                pl.BlockSpec((hw, pp_tot), lambda i: (0, 0), **kw),
                pl.BlockSpec((nbco, c), lambda i: (0, 0), **kw),
                pl.BlockSpec((nbco, pp_tot), lambda i: (0, 0), **kw),
                pl.BlockSpec((pp_tot, hwo), lambda i: (0, 0), **kw),
            ],
            out_specs=pl.BlockSpec((1, out_ch, hwo), lambda i: (i, 0, 0)),
            compiler_params=pltpu.CompilerParams(
                dimension_semantics=("parallel",),
                vmem_limit_bytes=48 * 1024 * 1024,
            ),
        )(x_flat, pmatT, wfull, biasmask, umatT)

    try:
        out = jax.block_until_ready(run(True))
    except Exception:
        # pl.Buffered(1) (single-buffered grid-invariant operands) unsupported on
        # this jax/backend combo -> fall back to default double-buffering.
        out = run(False)

    out = out.reshape(n, out_ch, height, width)
    if fuse:
        return out
    # TODO(synk): when (height, width) != (H, W) the identity channels cannot share
    # the kernel's lane dim; fall back to an XLA concat for that (non-PSPNet) case.
    return jnp.concatenate([x_nchw, out], axis=1)


# -----------------------------------------------------------------------------
# Pure numpy reference (follows PyTorch semantics op-by-op, f64)
# -----------------------------------------------------------------------------
def _reference_numpy(x, params, pool_sizes, height, width, eps=1e-5):
    x = np.asarray(x, np.float64)
    n, c, h, w = x.shape
    outs = [x]
    for p, (wk, gamma, beta, mean, var) in zip(pool_sizes, params):
        pooled = np.zeros((n, c, p, p))
        for i in range(p):
            h0, h1 = (i * h) // p, -(-((i + 1) * h) // p)
            for j in range(p):
                w0, w1 = (j * w) // p, -(-((j + 1) * w) // p)
                pooled[:, :, i, j] = x[:, :, h0:h1, w0:w1].mean(axis=(2, 3))
        conv = np.einsum("ncij,oc->noij", pooled, np.asarray(wk, np.float64))
        scale = np.asarray(gamma, np.float64) / np.sqrt(np.asarray(var, np.float64) + eps)
        shift = np.asarray(beta, np.float64) - np.asarray(mean, np.float64) * scale
        g = np.maximum(conv * scale[None, :, None, None] + shift[None, :, None, None], 0.0)
        up = np.zeros((n, g.shape[1], height, width))
        for hh in range(height):
            sh = hh * (p - 1) / (height - 1) if height > 1 else 0.0
            i0 = min(int(np.floor(sh)), p - 1); i1 = min(i0 + 1, p - 1); wh = sh - i0
            for ww in range(width):
                sw = ww * (p - 1) / (width - 1) if width > 1 else 0.0
                j0 = min(int(np.floor(sw)), p - 1); j1 = min(j0 + 1, p - 1); wwf = sw - j0
                up[:, :, hh, ww] = ((1 - wh) * (1 - wwf) * g[:, :, i0, j0]
                                    + (1 - wh) * wwf * g[:, :, i0, j1]
                                    + wh * (1 - wwf) * g[:, :, i1, j0]
                                    + wh * wwf * g[:, :, i1, j1])
        outs.append(up)
    return np.concatenate(outs, axis=1)


# -----------------------------------------------------------------------------
if __name__ == "__main__":
    key = jax.random.PRNGKey(0)
    N, C, H, W = 2, 8, 16, 16
    pool_sizes = (6, 3, 2, 1)
    height, width = H, W
    Co = C // len(pool_sizes)  # == 2

    keys = jax.random.split(key, 1 + 5 * len(pool_sizes))
    x = jax.random.normal(keys[0], (N, C, H, W), jnp.float32)

    params = []
    for b in range(len(pool_sizes)):
        kw, kg, kb, km, kv = keys[1 + 5 * b: 1 + 5 * (b + 1)]
        wk = 0.2 * jax.random.normal(kw, (Co, C), jnp.float32)         # Conv2d (Co, C, 1, 1) squeezed
        gamma = 1.0 + 0.1 * jax.random.normal(kg, (Co,), jnp.float32)  # BN weight
        beta = 0.1 * jax.random.normal(kb, (Co,), jnp.float32)         # BN bias
        mean = 0.1 * jax.random.normal(km, (Co,), jnp.float32)         # BN running_mean
        var = 1.0 + 0.1 * jax.random.uniform(kv, (Co,), jnp.float32)   # BN running_var
        params.append((wk, gamma, beta, mean, var))

    out = pyramid_pooling_forward(x, params, pool_sizes, height, width)
    out = jax.block_until_ready(out)

    assert out.shape == (N, C + Co * len(pool_sizes), height, width), out.shape

    ref = _reference_numpy(np.asarray(x),
                           [tuple(np.asarray(t) for t in prm) for prm in params],
                           pool_sizes, height, width)
    # bf16 operands / MXU compute with f32 accumulation -> ~1e-2-level abs error vs f64.
    np.testing.assert_allclose(np.asarray(out), ref, rtol=2e-2, atol=2e-2)

    print("KERNEL_OK")
</pallas_src>

<mosaic_0001>
module attributes {stable_mosaic.version = 11 : i64} {
  func.func @kernel(%arg0: i32, %arg1: memref<1x8x256xf32, #tpu.memory_space<vmem>>, %arg2: memref<256x128xbf16, #tpu.memory_space<vmem>>, %arg3: memref<8x8xbf16, #tpu.memory_space<vmem>>, %arg4: memref<8x128xf32, #tpu.memory_space<vmem>>, %arg5: memref<128x256xbf16, #tpu.memory_space<vmem>>, %arg6: memref<1x16x256xf32, #tpu.memory_space<vmem>>) attributes {dimension_semantics = [#tpu.dimension_semantics<parallel>], iteration_bounds = array<i64: 2>, scalar_prefetch = 0 : i64, scratch_operands = 0 : i64, tpu.core_type = #tpu.core_type<tc>, window_params = [{transform_indices = @transform_0, window_bounds = array<i64: 1, 8, 256>}, {pipeline_mode = #tpu.pipeline_mode<synchronous>, transform_indices = @transform_1, window_bounds = array<i64: 256, 128>}, {pipeline_mode = #tpu.pipeline_mode<synchronous>, transform_indices = @transform_2, window_bounds = array<i64: 8, 8>}, {pipeline_mode = #tpu.pipeline_mode<synchronous>, transform_indices = @transform_3, window_bounds = array<i64: 8, 128>}, {pipeline_mode = #tpu.pipeline_mode<synchronous>, transform_indices = @transform_4, window_bounds = array<i64: 128, 256>}, {transform_indices = @transform_5, window_bounds = array<i64: 1, 16, 256>}]} {
    %c0 = arith.constant 0 : index
    %c0_0 = arith.constant 0 : index
    %c0_1 = arith.constant 0 : index
    %0 = vector.load %arg1[%c0, %c0_0, %c0_1] : memref<1x8x256xf32, #tpu.memory_space<vmem>>, vector<1x8x256xf32>
    %1 = vector.shape_cast %0 : vector<1x8x256xf32> to vector<8x256xf32>
    %2 = arith.truncf %1 : vector<8x256xf32> to vector<8x256xbf16>
    %c0_2 = arith.constant 0 : index
    %c0_3 = arith.constant 0 : index
    %3 = vector.load %arg2[%c0_2, %c0_3] : memref<256x128xbf16, #tpu.memory_space<vmem>>, vector<256x128xbf16>
    %cst = arith.constant dense<0.000000e+00> : vector<8x128xf32>
    %4 = tpu.matmul %2, %3, %cst {dimension_numbers = #tpu.dot_dimension_numbers<[1], [0], [0], [1], [0, 0, 1, 1], [], []>} : vector<8x256xbf16>, vector<256x128xbf16>, vector<8x128xf32> -> vector<8x128xf32>
    %c0_4 = arith.constant 0 : index
    %c0_5 = arith.constant 0 : index
    %5 = vector.load %arg3[%c0_4, %c0_5] : memref<8x8xbf16, #tpu.memory_space<vmem>>, vector<8x8xbf16>
    %6 = arith.truncf %4 : vector<8x128xf32> to vector<8x128xbf16>
    %cst_6 = arith.constant dense<0.000000e+00> : vector<8x128xf32>
    %7 = tpu.matmul %5, %6, %cst_6 {dimension_numbers = #tpu.dot_dimension_numbers<[1], [0], [0], [1], [0, 0, 1, 1], [], []>} : vector<8x8xbf16>, vector<8x128xbf16>, vector<8x128xf32> -> vector<8x128xf32>
    %c0_7 = arith.constant 0 : index
    %c0_8 = arith.constant 0 : index
    %8 = vector.load %arg4[%c0_7, %c0_8] : memref<8x128xf32, #tpu.memory_space<vmem>>, vector<8x128xf32>
    %9 = arith.addf %7, %8 : vector<8x128xf32>
    %cst_9 = arith.constant 0.000000e+00 : f32
    %10 = vector.broadcast %cst_9 : f32 to vector<8x128xf32>
    %11 = arith.maximumf %9, %10 : vector<8x128xf32>
    %12 = arith.truncf %11 : vector<8x128xf32> to vector<8x128xbf16>
    %c0_10 = arith.constant 0 : index
    %c0_11 = arith.constant 0 : index
    %13 = vector.load %arg5[%c0_10, %c0_11] : memref<128x256xbf16, #tpu.memory_space<vmem>>, vector<128x256xbf16>
    %cst_12 = arith.constant dense<0.000000e+00> : vector<8x256xf32>
    %14 = tpu.matmul %12, %13, %cst_12 {dimension_numbers = #tpu.dot_dimension_numbers<[1], [0], [0], [1], [0, 0, 1, 1], [], []>} : vector<8x128xbf16>, vector<128x256xbf16>, vector<8x256xf32> -> vector<8x256xf32>
    %c0_13 = arith.constant 0 : index
    %c0_14 = arith.constant 0 : index
    %c0_15 = arith.constant 0 : index
    %15 = vector.load %arg6[%c0_13, %c0_14, %c0_15] : memref<1x16x256xf32, #tpu.memory_space<vmem>>, vector<1x8x256xf32>
    %16 = vector.shape_cast %15 : vector<1x8x256xf32> to vector<8x256xf32>
    %17 = vector.shape_cast %1 : vector<8x256xf32> to vector<1x8x256xf32>
    tpu.vector_store %arg6[%c0_13, %c0_14, %c0_15], %17 {strides = array<i32>} : memref<1x16x256xf32, #tpu.memory_space<vmem>>, vector<1x8x256xf32>,
    %c0_16 = arith.constant 0 : index
    %c8 = arith.constant 8 : index
    %c0_17 = arith.constant 0 : index
    %18 = vector.load %arg6[%c0_16, %c8, %c0_17] : memref<1x16x256xf32, #tpu.memory_space<vmem>>, vector<1x8x256xf32>
    %19 = vector.shape_cast %18 : vector<1x8x256xf32> to vector<8x256xf32>
    %20 = vector.shape_cast %14 : vector<8x256xf32> to vector<1x8x256xf32>
    tpu.vector_store %arg6[%c0_16, %c8, %c0_17], %20 {strides = array<i32>} : memref<1x16x256xf32, #tpu.memory_space<vmem>>, vector<1x8x256xf32>,
    return
  }
  func.func @transform_0(%arg0: i32) -> (i32, i32, i32) {
    %c0_i32 = arith.constant 0 : i32
    %c0_i32_0 = arith.constant 0 : i32
    %c0_i32_1 = arith.constant 0 : i32
    return %arg0, %c0_i32, %c0_i32_0 : i32, i32, i32
  }
  func.func @transform_1(%arg0: i32) -> (i32, i32) {
    %c0_i32 = arith.constant 0 : i32
    %c0_i32_0 = arith.constant 0 : i32
    %c0_i32_1 = arith.constant 0 : i32
    return %c0_i32, %c0_i32_0 : i32, i32
  }
  func.func @transform_2(%arg0: i32) -> (i32, i32) {
    %c0_i32 = arith.constant 0 : i32
    %c0_i32_0 = arith.constant 0 : i32
    %c0_i32_1 = arith.constant 0 : i32
    return %c0_i32, %c0_i32_0 : i32, i32
  }
  func.func @transform_3(%arg0: i32) -> (i32, i32) {
    %c0_i32 = arith.constant 0 : i32
    %c0_i32_0 = arith.constant 0 : i32
    %c0_i32_1 = arith.constant 0 : i32
    return %c0_i32, %c0_i32_0 : i32, i32
  }
  func.func @transform_4(%arg0: i32) -> (i32, i32) {
    %c0_i32 = arith.constant 0 : i32
    %c0_i32_0 = arith.constant 0 : i32
    %c0_i32_1 = arith.constant 0 : i32
    return %c0_i32, %c0_i32_0 : i32, i32
  }
  func.func @transform_5(%arg0: i32) -> (i32, i32, i32) {
    %c0_i32 = arith.constant 0 : i32
    %c0_i32_0 = arith.constant 0 : i32
    %c0_i32_1 = arith.constant 0 : i32
    return %arg0, %c0_i32, %c0_i32_0 : i32, i32, i32
  }
}

module attributes {stable_mosaic.version = 11 : i64} {
  func.func @kernel(%arg0: i32, %arg1: memref<1x8x256xf32, #tpu.memory_space<vmem>>, %arg2: memref<256x128xbf16, #tpu.memory_space<vmem>>, %arg3: memref<8x8xbf16, #tpu.memory_space<vmem>>, %arg4: memref<8x128xf32, #tpu.memory_space<vmem>>, %arg5: memref<128x256xbf16, #tpu.memory_space<vmem>>, %arg6: memref<1x16x256xf32, #tpu.memory_space<vmem>>) attributes {dimension_semantics = [#tpu.dimension_semantics<parallel>], iteration_bounds = array<i64: 2>, scalar_prefetch = 0 : i64, scratch_operands = 0 : i64, tpu.core_type = #tpu.core_type<tc>, window_params = [{transform_indices = @transform_0, window_bounds = array<i64: 1, 8, 256>}, {pipeline_mode = #tpu.pipeline_mode<synchronous>, transform_indices = @transform_1, window_bounds = array<i64: 256, 128>}, {pipeline_mode = #tpu.pipeline_mode<synchronous>, transform_indices = @transform_2, window_bounds = array<i64: 8, 8>}, {pipeline_mode = #tpu.pipeline_mode<synchronous>, transform_indices = @transform_3, window_bounds = array<i64: 8, 128>}, {pipeline_mode = #tpu.pipeline_mode<synchronous>, transform_indices = @transform_4, window_bounds = array<i64: 128, 256>}, {transform_indices = @transform_5, window_bounds = array<i64: 1, 16, 256>}]} {
    %c0 = arith.constant 0 : index
    %c0_0 = arith.constant 0 : index
    %c0_1 = arith.constant 0 : index
    %0 = vector.load %arg1[%c0, %c0_0, %c0_1] : memref<1x8x256xf32, #tpu.memory_space<vmem>>, vector<1x8x256xf32>
    %1 = vector.shape_cast %0 : vector<1x8x256xf32> to vector<8x256xf32>
    %2 = arith.truncf %1 : vector<8x256xf32> to vector<8x256xbf16>
    %c0_2 = arith.constant 0 : index
    %c0_3 = arith.constant 0 : index
    %3 = vector.load %arg2[%c0_2, %c0_3] : memref<256x128xbf16, #tpu.memory_space<vmem>>, vector<256x128xbf16>
    %cst = arith.constant dense<0.000000e+00> : vector<8x128xf32>
    %4 = tpu.matmul %2, %3, %cst {dimension_numbers = #tpu.dot_dimension_numbers<[1], [0], [0], [1], [0, 0, 1, 1], [], []>} : vector<8x256xbf16>, vector<256x128xbf16>, vector<8x128xf32> -> vector<8x128xf32>
    %c0_4 = arith.constant 0 : index
    %c0_5 = arith.constant 0 : index
    %5 = vector.load %arg3[%c0_4, %c0_5] : memref<8x8xbf16, #tpu.memory_space<vmem>>, vector<8x8xbf16>
    %6 = arith.truncf %4 : vector<8x128xf32> to vector<8x128xbf16>
    %cst_6 = arith.constant dense<0.000000e+00> : vector<8x128xf32>
    %7 = tpu.matmul %5, %6, %cst_6 {dimension_numbers = #tpu.dot_dimension_numbers<[1], [0], [0], [1], [0, 0, 1, 1], [], []>} : vector<8x8xbf16>, vector<8x128xbf16>, vector<8x128xf32> -> vector<8x128xf32>
    %c0_7 = arith.constant 0 : index
    %c0_8 = arith.constant 0 : index
    %8 = vector.load %arg4[%c0_7, %c0_8] : memref<8x128xf32, #tpu.memory_space<vmem>>, vector<8x128xf32>
    %9 = arith.addf %7, %8 : vector<8x128xf32>
    %cst_9 = arith.constant 0.000000e+00 : f32
    %10 = vector.broadcast %cst_9 : f32 to vector<8x128xf32>
    %11 = arith.maximumf %9, %10 : vector<8x128xf32>
    %12 = arith.truncf %11 : vector<8x128xf32> to vector<8x128xbf16>
    %c0_10 = arith.constant 0 : index
    %c0_11 = arith.constant 0 : index
    %13 = vector.load %arg5[%c0_10, %c0_11] : memref<128x256xbf16, #tpu.memory_space<vmem>>, vector<128x256xbf16>
    %cst_12 = arith.constant dense<0.000000e+00> : vector<8x256xf32>
    %14 = tpu.matmul %12, %13, %cst_12 {dimension_numbers = #tpu.dot_dimension_numbers<[1], [0], [0], [1], [0, 0, 1, 1], [], []>} : vector<8x128xbf16>, vector<128x256xbf16>, vector<8x256xf32> -> vector<8x256xf32>
    %c0_13 = arith.constant 0 : index
    %c0_14 = arith.constant 0 : index
    %c0_15 = arith.constant 0 : index
    %15 = vector.load %arg6[%c0_13, %c0_14, %c0_15] : memref<1x16x256xf32, #tpu.memory_space<vmem>>, vector<1x8x256xf32>
    %16 = vector.shape_cast %15 : vector<1x8x256xf32> to vector<8x256xf32>
    %17 = vector.shape_cast %1 : vector<8x256xf32> to vector<1x8x256xf32>
    tpu.vector_store %arg6[%c0_13, %c0_14, %c0_15], %17 {strides = array<i32>} : memref<1x16x256xf32, #tpu.memory_space<vmem>>, vector<1x8x256xf32>,
    %c0_16 = arith.constant 0 : index
    %c8 = arith.constant 8 : index
    %c0_17 = arith.constant 0 : index
    %18 = vector.load %arg6[%c0_16, %c8, %c0_17] : memref<1x16x256xf32, #tpu.memory_space<vmem>>, vector<1x8x256xf32>
    %19 = vector.shape_cast %18 : vector<1x8x256xf32> to vector<8x256xf32>
    %20 = vector.shape_cast %14 : vector<8x256xf32> to vector<1x8x256xf32>
    tpu.vector_store %arg6[%c0_16, %c8, %c0_17], %20 {strides = array<i32>} : memref<1x16x256xf32, #tpu.memory_space<vmem>>, vector<1x8x256xf32>,
    return
  }
  func.func @transform_0(%arg0: i32) -> (i32, i32, i32) {
    %c0_i32 = arith.constant 0 : i32
    %c0_i32_0 = arith.constant 0 : i32
    %c0_i32_1 = arith.constant 0 : i32
    return %arg0, %c0_i32, %c0_i32_0 : i32, i32, i32
  }
  func.func @transform_1(%arg0: i32) -> (i32, i32) {
    %c0_i32 = arith.constant 0 : i32
    %c0_i32_0 = arith.constant 0 : i32
    %c0_i32_1 = arith.constant 0 : i32
    return %c0_i32, %c0_i32_0 : i32, i32
  }
  func.func @transform_2(%arg0: i32) -> (i32, i32) {
    %c0_i32 = arith.constant 0 : i32
    %c0_i32_0 = arith.constant 0 : i32
    %c0_i32_1 = arith.constant 0 : i32
    return %c0_i32, %c0_i32_0 : i32, i32
  }
  func.func @transform_3(%arg0: i32) -> (i32, i32) {
    %c0_i32 = arith.constant 0 : i32
    %c0_i32_0 = arith.constant 0 : i32
    %c0_i32_1 = arith.constant 0 : i32
    return %c0_i32, %c0_i32_0 : i32, i32
  }
  func.func @transform_4(%arg0: i32) -> (i32, i32) {
    %c0_i32 = arith.constant 0 : i32
    %c0_i32_0 = arith.constant 0 : i32
    %c0_i32_1 = arith.constant 0 : i32
    return %c0_i32, %c0_i32_0 : i32, i32
  }
  func.func @transform_5(%arg0: i32) -> (i32, i32, i32) {
    %c0_i32 = arith.constant 0 : i32
    %c0_i32_0 = arith.constant 0 : i32
    %c0_i32_1 = arith.constant 0 : i32
    return %arg0, %c0_i32, %c0_i32_0 : i32, i32, i32
  }
}

</mosaic_0001>

<llo_original>
// kernel: tpu_custom_call.1
$region0: #{tpu_custom_call.1}
  #allocation0 [shape = 'u32[]', space=smem, size = 0x4, offset = 0x4, fixed_abs, tag = 'smem constant byte address 0x4 - core index']
  #allocation1 [shape = 'u32[72,128]{1,0:T(1,128)}', space=vmem, size = 0x9000, scoped, tag = 'internal scratch']
  %s0 = inlined_call_operand.hbm [shape: f32[2,8,256], index: 0, kind: input, shape index: {}]
  %s1 = inlined_call_operand.hbm [shape: bf16[256,128], index: 1, kind: input, shape index: {}]
  %s2 = inlined_call_operand.hbm [shape: bf16[8,8], index: 2, kind: input, shape index: {}]
  %s3 = inlined_call_operand.hbm [shape: f32[8,128], index: 3, kind: input, shape index: {}]
  %s4 = inlined_call_operand.hbm [shape: bf16[128,256], index: 4, kind: input, shape index: {}]
  %s5 = inlined_call_operand.hbm [shape: f32[2,16,256], index: 5, kind: output, shape index: {}]
  %s6 = sld [smem:[#allocation0]]
  $region73: #{tpu_custom_call.1} parent=0
    _
  %s8 = ssub.s32 1, %s6
  %s9 = scalar_select 0, %s8, %s6
  $region1: #{tpu_custom_call.1} parent=0
    #allocation2 [shape = 'u8[16384]{0}', space=vmem, size = 0x4000, scoped, tag = 'input window, operand 0']
    #allocation3 [shape = 's32[2]{0}', space=sflag, size = 0x8, scoped, tag = 'scoped memory for tpu_custom_call.1']
    #allocation4 [shape = 's32[2]{0}', space=sflag, size = 0x8, scoped, tag = 'scoped memory for tpu_custom_call.1']
    #allocation5 [shape = 'u8[65536]{0}', space=vmem, size = 0x10000, scoped, tag = 'input window, operand 1, single buffered']
    #allocation6 [shape = 's32[1]{0}', space=sflag, size = 0x4, scoped, tag = 'scoped memory for tpu_custom_call.1']
    #allocation7 [shape = 'u8[2048]{0}', space=vmem, size = 0x800, scoped, tag = 'input window, operand 2, single buffered']
    #allocation8 [shape = 'u8[4096]{0}', space=vmem, size = 0x1000, scoped, tag = 'input window, operand 3, single buffered']
    #allocation9 [shape = 's32[1]{0}', space=sflag, size = 0x4, scoped, tag = 'scoped memory for tpu_custom_call.1']
    #allocation10 [shape = 'u8[65536]{0}', space=vmem, size = 0x10000, scoped, tag = 'input window, operand 4, single buffered']
    #allocation11 [shape = 'u8[32768]{0}', space=vmem, size = 0x8000, scoped, tag = 'output window, operand 0']
    %10 = vsyncpa [#allocation3], 0
    %s11 = scalar_lea.sflag [#allocation3], 1
    %12 = vsyncpa %s11, 0
    %13 = vsyncpa [#allocation6], 0
    %14 = vsyncpa [#allocation9], 0
    %15 = vsyncpa [#allocation4], 0
    %s16 = scalar_lea.sflag [#allocation4], 1
    %17 = vsyncpa %s16, 0
    loop: start=0, step=1, limit=4
    $region2: #{tpu_custom_call.1} parent=1 // loop_pre_header
      _
    $region3: #{tpu_custom_call.1} parent=1 // loop_header
      %s19 = sphi 0, %s23
      %p20 = scmp.ge.s32.totalorder %s19, 4
      %s29 = sphi 0, %s31
      %s32 = sphi 0, %s29
      %s33 = sphi 0, %s32
      %s49 = sphi 0, %s33
      %s53 = sphi 0, %s53
      %s55 = sphi 0, %s53
      %s56 = sphi 0, %s55
      %s70 = sphi 0, %s56
      %s74 = sphi 0, %s74
      %s76 = sphi 0, %s74
      %s77 = sphi 0, %s76
      %s91 = sphi 0, %s77
      %s95 = sphi 0, %s95
      %s97 = sphi 0, %s95
      %s98 = sphi 0, %s97
      %s112 = sphi 0, %s98
      %s116 = sphi 0, %s116
      %s118 = sphi 0, %s116
      %s119 = sphi 0, %s118
      %s133 = sphi 0, %s119
      %s139 = sphi 0, %s141
      %s142 = sphi 0, %s139
      %s143 = sphi 0, %s142
      %s159 = sphi 0, %s143
    $region4: #{tpu_custom_call.1} parent=1 // loop_header_branch
      %22 = sbr.rel (%p20) target = $region8
    $region5: #{tpu_custom_call.1} parent=1 // loop_body
      %s24 = ssub.s32 %s19, 1
      %s25 = ssub.s32 %s19, 2
      %s26 = sadd.s32 %s19, 1
      %s27 = ssub.s32 %s19, %s26
      %p28 = scmp.eq.s32.totalorder %s27, 0
      %s30 = sadd.s32 %s29, 1
      %s31 = scalar_select %p28, %s29, %s30
      %p34 = pneg %p28
      %p35 = scmp.eq.s32.totalorder %s19, 1
      %p36 = por %p34, %p35
      %p37 = scmp.ne.s32.totalorder %s29, %s32
      %p38 = scmp.eq.s32.totalorder %s19, 0
      %p39 = por %p37, %p38
      %p40 = scmp.ne.s32.totalorder %s29, %s32
      %p41 = scmp.eq.s32.totalorder %s24, 1
      %p42 = por %p40, %p41
      %p43 = scmp.ne.s32.totalorder %s32, %s33
      %p44 = scmp.eq.s32.totalorder %s24, 0
      %p45 = por %p43, %p44
      %p46 = scmp.ne.s32.totalorder %s32, %s33
      %p47 = scmp.eq.s32.totalorder %s25, 1
      %p48 = por %p46, %p47
      %p50 = scmp.ne.s32.totalorder %s33, %s49
      %p51 = scmp.eq.s32.totalorder %s25, 0
      %p52 = por %p50, %p51
      %s54 = sadd.s32 %s53, 1
      %p57 = scmp.eq.s32.totalorder %s19, 1
      %p58 = scmp.ne.s32.totalorder %s53, %s55
      %p59 = scmp.eq.s32.totalorder %s19, 0
      %p60 = por %p58, %p59
      %p61 = scmp.ne.s32.totalorder %s53, %s55
      %p62 = scmp.eq.s32.totalorder %s24, 1
      %p63 = por %p61, %p62
      %p64 = scmp.ne.s32.totalorder %s55, %s56
      %p65 = scmp.eq.s32.totalorder %s24, 0
      %p66 = por %p64, %p65
      %p67 = scmp.ne.s32.totalorder %s55, %s56
      %p68 = scmp.eq.s32.totalorder %s25, 1
      %p69 = por %p67, %p68
      %p71 = scmp.ne.s32.totalorder %s56, %s70
      %p72 = scmp.eq.s32.totalorder %s25, 0
      %p73 = por %p71, %p72
      %s75 = sadd.s32 %s74, 1
      %p78 = scmp.eq.s32.totalorder %s19, 1
      %p79 = scmp.ne.s32.totalorder %s74, %s76
      %p80 = scmp.eq.s32.totalorder %s19, 0
      %p81 = por %p79, %p80
      %p82 = scmp.ne.s32.totalorder %s74, %s76
      %p83 = scmp.eq.s32.totalorder %s24, 1
      %p84 = por %p82, %p83
      %p85 = scmp.ne.s32.totalorder %s76, %s77
      %p86 = scmp.eq.s32.totalorder %s24, 0
      %p87 = por %p85, %p86
      %p88 = scmp.ne.s32.totalorder %s76, %s77
      %p89 = scmp.eq.s32.totalorder %s25, 1
      %p90 = por %p88, %p89
      %p92 = scmp.ne.s32.totalorder %s77, %s91
      %p93 = scmp.eq.s32.totalorder %s25, 0
      %p94 = por %p92, %p93
      %s96 = sadd.s32 %s95, 1
      %p99 = scmp.eq.s32.totalorder %s19, 1
      %p100 = scmp.ne.s32.totalorder %s95, %s97
      %p101 = scmp.eq.s32.totalorder %s19, 0
      %p102 = por %p100, %p101
      %p103 = scmp.ne.s32.totalorder %s95, %s97
      %p104 = scmp.eq.s32.totalorder %s24, 1
      %p105 = por %p103, %p104
      %p106 = scmp.ne.s32.totalorder %s97, %s98
      %p107 = scmp.eq.s32.totalorder %s24, 0
      %p108 = por %p106, %p107
      %p109 = scmp.ne.s32.totalorder %s97, %s98
      %p110 = scmp.eq.s32.totalorder %s25, 1
      %p111 = por %p109, %p110
      %p113 = scmp.ne.s32.totalorder %s98, %s112
      %p114 = scmp.eq.s32.totalorder %s25, 0
      %p115 = por %p113, %p114
      %s117 = sadd.s32 %s116, 1
      %p120 = scmp.eq.s32.totalorder %s19, 1
      %p121 = scmp.ne.s32.totalorder %s116, %s118
      %p122 = scmp.eq.s32.totalorder %s19, 0
      %p123 = por %p121, %p122
      %p124 = scmp.ne.s32.totalorder %s116, %s118
      %p125 = scmp.eq.s32.totalorder %s24, 1
      %p126 = por %p124, %p125
      %p127 = scmp.ne.s32.totalorder %s118, %s119
      %p128 = scmp.eq.s32.totalorder %s24, 0
      %p129 = por %p127, %p128
      %p130 = scmp.ne.s32.totalorder %s118, %s119
      %p131 = scmp.eq.s32.totalorder %s25, 1
      %p132 = por %p130, %p131
      %p134 = scmp.ne.s32.totalorder %s119, %s133
      %p135 = scmp.eq.s32.totalorder %s25, 0
      %p136 = por %p134, %p135
      %s137 = ssub.s32 %s19, %s26
      %p138 = scmp.eq.s32.totalorder %s137, 0
      %s140 = sadd.s32 %s139, 1
      %s141 = scalar_select %p138, %s139, %s140
      %p144 = pneg %p138
      %p145 = scmp.eq.s32.totalorder %s19, 1
      %p146 = por %p144, %p145
      %p147 = scmp.ne.s32.totalorder %s139, %s142
      %p148 = scmp.eq.s32.totalorder %s19, 0
      %p149 = por %p147, %p148
      %p150 = scmp.ne.s32.totalorder %s139, %s142
      %p151 = scmp.eq.s32.totalorder %s24, 1
      %p152 = por %p150, %p151
      %p153 = scmp.ne.s32.totalorder %s142, %s143
      %p154 = scmp.eq.s32.totalorder %s24, 0
      %p155 = por %p153, %p154
      %p156 = scmp.ne.s32.totalorder %s142, %s143
      %p157 = scmp.eq.s32.totalorder %s25, 1
      %p158 = por %p156, %p157
      %p160 = scmp.ne.s32.totalorder %s143, %s159
      %p161 = scmp.eq.s32.totalorder %s25, 0
      %p162 = por %p160, %p161
      %p163 = scmp.le.s32.totalorder 1, %s19
      %p164 = scmp.lt.s32.totalorder %s19, 3
      %p165 = pnand %p163, %p164
      %p166 = pneg %p165
      // Predicated region
      $region9: #{tpu_custom_call.1} parent=5 // pred_check
        _
      $region10: #{tpu_custom_call.1} parent=5 // pred_check_branch
        %168 = sbr.rel (%p165) target = $region12
      $region11: #{tpu_custom_call.1} parent=5 // pred_region
        %s169 = ssub.s32 %s19, 1
        // Predicated region
        $region13: #{tpu_custom_call.1} parent=11 // pred_check
          %p170 = pneg %p66
        $region14: #{tpu_custom_call.1} parent=11 // pred_check_branch
          %172 = sbr.rel (%p170) target = $region16
        $region15: #{tpu_custom_call.1} parent=11 // pred_region
          %174 = vsyncadd [#allocation6], 0
          %s175 = sshll.u32 %s1, 4
          %s176 = int_to_ptr.hbm [resolvable:$true] %s175
          %s177 = sshll.u32 [#allocation5], 4
          %s178 = int_to_ptr.vmem [resolvable:$true] %s177
          %183 = dma.hbm_to_vmem [thread:$0]  %s176, 2048, %s178, [#allocation6], 64, 64, 4
        $region16: #{tpu_custom_call.1} parent=11 // pred_fallthru
          _
        // Predicated region
        $region17: #{tpu_custom_call.1} parent=11 // pred_check
          %p184 = pneg %p87
        $region18: #{tpu_custom_call.1} parent=11 // pred_check_branch
          %186 = sbr.rel (%p184) target = $region20
        $region19: #{tpu_custom_call.1} parent=11 // pred_region
          %188 = vsyncadd [#allocation6], 0
          %s190 = sshll.u32 %s2, 4
          %s191 = int_to_ptr.hbm [resolvable:$true] %s190
          %s192 = sshll.u32 [#allocation7], 4
          %s193 = int_to_ptr.vmem [resolvable:$true] %s192
          %195 = dma.hbm_to_vmem [thread:$0]  %s191, 64, %s193, [#allocation6]
        $region20: #{tpu_custom_call.1} parent=11 // pred_fallthru
          _
        // Predicated region
        $region21: #{tpu_custom_call.1} parent=11 // pred_check
          %p196 = pneg %p108
        $region22: #{tpu_custom_call.1} parent=11 // pred_check_branch
          %198 = sbr.rel (%p196) target = $region24
        $region23: #{tpu_custom_call.1} parent=11 // pred_region
          %200 = vsyncadd [#allocation9], 0
          %s202 = sshll.u32 %s3, 4
          %s203 = int_to_ptr.hbm [resolvable:$true] %s202
          %s204 = sshll.u32 [#allocation8], 4
          %s205 = int_to_ptr.vmem [resolvable:$true] %s204
          %207 = dma.hbm_to_vmem [thread:$0]  %s203, 128, %s205, [#allocation9]
        $region24: #{tpu_custom_call.1} parent=11 // pred_fallthru
          _
        // Predicated region
        $region25: #{tpu_custom_call.1} parent=11 // pred_check
          %p208 = pneg %p129
        $region26: #{tpu_custom_call.1} parent=11 // pred_check_branch
          %210 = sbr.rel (%p208) target = $region28
        $region27: #{tpu_custom_call.1} parent=11 // pred_region
          %212 = vsyncadd [#allocation9], 0
          %s213 = sshll.u32 %s4, 4
          %s214 = int_to_ptr.hbm [resolvable:$true] %s213
          %s215 = sshll.u32 [#allocation10], 4
          %s216 = int_to_ptr.vmem [resolvable:$true] %s215
          %221 = dma.hbm_to_vmem [thread:$0]  %s214, 2048, %s216, [#allocation9], 128, 128, 8
        $region28: #{tpu_custom_call.1} parent=11 // pred_fallthru
          _
      $region12: #{tpu_custom_call.1} parent=5 // pred_fallthru
        _
      %p222 = scmp.lt.s32.totalorder %s19, 2
      // Predicated region
      $region29: #{tpu_custom_call.1} parent=5 // pred_check
        %p223 = pneg %p222
      $region30: #{tpu_custom_call.1} parent=5 // pred_check_branch
        %225 = sbr.rel (%p223) target = $region32
      $region31: #{tpu_custom_call.1} parent=5 // pred_region
        // Predicated region
        $region33: #{tpu_custom_call.1} parent=31 // pred_check
          %p226 = pneg %p39
        $region34: #{tpu_custom_call.1} parent=31 // pred_check_branch
          %228 = sbr.rel (%p226) target = $region36
        $region35: #{tpu_custom_call.1} parent=31 // pred_region
          %s229 = sand.u32 %s29, 1
          %s230 = scalar_lea.sflag [#allocation3], %s229
          %s231 = sand.u32 %s29, 1
          %s232 = smul.addr %s231, 16
          %s233 = scalar_lea.vmem [#allocation2], %s232
          %235 = vsyncadd %s230, 0
          %s236 = smul.addr %s19, 2
          %s237 = smul.addr %s236, 8
          %s238 = scalar_lea.hbm %s0, %s237
          %s240 = sshll.u32 %s238, 4
          %s241 = int_to_ptr.hbm [resolvable:$true] %s240
          %s242 = sshll.u32 %s233, 4
          %s243 = int_to_ptr.vmem [resolvable:$true] %s242
          %245 = dma.hbm_to_vmem [thread:$0]  %s241, 256, %s243, %s230
        $region36: #{tpu_custom_call.1} parent=31 // pred_fallthru
          _
      $region32: #{tpu_custom_call.1} parent=5 // pred_fallthru
        _
      %p246 = scmp.le.s32.totalorder 1, %s19
      %p247 = scmp.lt.s32.totalorder %s19, 3
      %p248 = pnand %p246, %p247
      %p249 = pneg %p248
      // Predicated region
      $region37: #{tpu_custom_call.1} parent=5 // pred_check
        _
      $region38: #{tpu_custom_call.1} parent=5 // pred_check_branch
        %251 = sbr.rel (%p248) target = $region40
      $region39: #{tpu_custom_call.1} parent=5 // pred_region
        %s252 = ssub.s32 %s19, 1
        %s253 = sand.u32 %s32, 1
        %s254 = scalar_lea.sflag [#allocation3], %s253
        %s255 = sand.u32 %s32, 1
        %s256 = smul.addr %s255, 16
        %s257 = scalar_lea.vmem [#allocation2], %s256
        // Predicated region
        $region41: #{tpu_custom_call.1} parent=39 // pred_check
          %p258 = pneg %p45
        $region42: #{tpu_custom_call.1} parent=39 // pred_check_branch
          %260 = sbr.rel (%p258) target = $region44
        $region43: #{tpu_custom_call.1} parent=39 // pred_region
          %262 = dma.done %s254, 256
        $region44: #{tpu_custom_call.1} parent=39 // pred_fallthru
          _
        // Predicated region
        $region45: #{tpu_custom_call.1} parent=39 // pred_check
          %p263 = pneg %p66
        $region46: #{tpu_custom_call.1} parent=39 // pred_check_branch
          %265 = sbr.rel (%p263) target = $region48
        $region47: #{tpu_custom_call.1} parent=39 // pred_region
          %267 = dma.done [#allocation6], 2048
        $region48: #{tpu_custom_call.1} parent=39 // pred_fallthru
          _
        // Predicated region
        $region49: #{tpu_custom_call.1} parent=39 // pred_check
          %p268 = pneg %p87
        $region50: #{tpu_custom_call.1} parent=39 // pred_check_branch
          %270 = sbr.rel (%p268) target = $region52
        $region51: #{tpu_custom_call.1} parent=39 // pred_region
          %272 = dma.done [#allocation6], 64
        $region52: #{tpu_custom_call.1} parent=39 // pred_fallthru
          _
        // Predicated region
        $region53: #{tpu_custom_call.1} parent=39 // pred_check
          %p273 = pneg %p108
        $region54: #{tpu_custom_call.1} parent=39 // pred_check_branch
          %275 = sbr.rel (%p273) target = $region56
        $region55: #{tpu_custom_call.1} parent=39 // pred_region
          %277 = dma.done [#allocation9], 128
        $region56: #{tpu_custom_call.1} parent=39 // pred_fallthru
          _
        // Predicated region
        $region57: #{tpu_custom_call.1} parent=39 // pred_check
          %p278 = pneg %p129
        $region58: #{tpu_custom_call.1} parent=39 // pred_check_branch
          %280 = sbr.rel (%p278) target = $region60
        $region59: #{tpu_custom_call.1} parent=39 // pred_region
          %282 = dma.done [#allocation9], 2048
        $region60: #{tpu_custom_call.1} parent=39 // pred_fallthru
          _
        %s283 = sand.u32 %s32, 1
        %s284 = scalar_lea.sflag [#allocation3], %s283
        %s285 = sand.u32 %s32, 1
        %s286 = smul.addr %s285, 16
        %s287 = scalar_lea.vmem [#allocation2], %s286
        %p288 = pneg %p45
        %p289 = pneg %p42
        %p290 = pneg %p66
        %p291 = pneg %p63
        %p292 = pneg %p87
        %p293 = pneg %p84
        %p294 = pneg %p108
        %p295 = pneg %p105
        %p296 = pneg %p129
        %p297 = pneg %p126
        %p298 = pneg %p155
        %p299 = pneg %p152
        %s300 = sand.u32 %s142, 1
        %s301 = scalar_lea.sflag [#allocation4], %s300
        %s302 = sand.u32 %s142, 1
        %s303 = smul.addr %s302, 32
        %s304 = scalar_lea.vmem [#allocation11], %s303
        %v306 = vld [vmem:[%s257] sm:$0xff]
        %v307 = vld [vmem:[%s257 + $0x8] sm:$0xff]
        %v308 = vpack.c.bf16 %v306, %v306
        %v309 = vpack.c.bf16 %v307, %v307
        %v310 = vld [vmem:[#allocation5] sm:$0xf]
        %v311 = vld [vmem:[#allocation5 + $0x4] sm:$0xf]
        %v312 = vld [vmem:[#allocation5 + $0x8] sm:$0xf]
        %v313 = vld [vmem:[#allocation5 + $0xc] sm:$0xf]
        %v314 = vld [vmem:[#allocation5 + $0x10] sm:$0xf]
        %v315 = vld [vmem:[#allocation5 + $0x14] sm:$0xf]
        %v316 = vld [vmem:[#allocation5 + $0x18] sm:$0xf]
        %v317 = vld [vmem:[#allocation5 + $0x1c] sm:$0xf]
        %v318 = vld [vmem:[#allocation5 + $0x20] sm:$0xf]
        %v319 = vld [vmem:[#allocation5 + $0x24] sm:$0xf]
        %v320 = vld [vmem:[#allocation5 + $0x28] sm:$0xf]
        %v321 = vld [vmem:[#allocation5 + $0x2c] sm:$0xf]
        %v322 = vld [vmem:[#allocation5 + $0x30] sm:$0xf]
        %v323 = vld [vmem:[#allocation5 + $0x34] sm:$0xf]
        %v324 = vld [vmem:[#allocation5 + $0x38] sm:$0xf]
        %v325 = vld [vmem:[#allocation5 + $0x3c] sm:$0xf]
        %v326 = vld [vmem:[#allocation5 + $0x40] sm:$0xf]
        %v327 = vld [vmem:[#allocation5 + $0x44] sm:$0xf]
        %v328 = vld [vmem:[#allocation5 + $0x48] sm:$0xf]
        %v329 = vld [vmem:[#allocation5 + $0x4c] sm:$0xf]
        %v330 = vld [vmem:[#allocation5 + $0x50] sm:$0xf]
        %v331 = vld [vmem:[#allocation5 + $0x54] sm:$0xf]
        %v332 = vld [vmem:[#allocation5 + $0x58] sm:$0xf]
        %v333 = vld [vmem:[#allocation5 + $0x5c] sm:$0xf]
        %v334 = vld [vmem:[#allocation5 + $0x60] sm:$0xf]
        %v335 = vld [vmem:[#allocation5 + $0x64] sm:$0xf]
        %v336 = vld [vmem:[#allocation5 + $0x68] sm:$0xf]
        %v337 = vld [vmem:[#allocation5 + $0x6c] sm:$0xf]
        %v338 = vld [vmem:[#allocation5 + $0x70] sm:$0xf]
        %v339 = vld [vmem:[#allocation5 + $0x74] sm:$0xf]
        %v340 = vld [vmem:[#allocation5 + $0x78] sm:$0xf]
        %v341 = vld [vmem:[#allocation5 + $0x7c] sm:$0xf]
        %v374 = vunpack.c.l.b16 %v310
        %v375 = vunpack.c.l.b16 %v311
        %v376 = vunpack.c.l.b16 %v312
        %v377 = vunpack.c.l.b16 %v313
        %v378 = vunpack.c.l.b16 %v314
        %v379 = vunpack.c.l.b16 %v315
        %v380 = vunpack.c.l.b16 %v316
        %v381 = vunpack.c.l.b16 %v317
        %v382 = vunpack.c.l.b16 %v318
        %v383 = vunpack.c.l.b16 %v319
        %v384 = vunpack.c.l.b16 %v320
        %v385 = vunpack.c.l.b16 %v321
        %v386 = vunpack.c.l.b16 %v322
        %v387 = vunpack.c.l.b16 %v323
        %v388 = vunpack.c.l.b16 %v324
        %v389 = vunpack.c.l.b16 %v325
        %v390 = vunpack.c.l.b16 %v326
        %v391 = vunpack.c.l.b16 %v327
        %v392 = vunpack.c.l.b16 %v328
        %v393 = vunpack.c.l.b16 %v329
        %v394 = vunpack.c.l.b16 %v330
        %v395 = vunpack.c.l.b16 %v331
        %v396 = vunpack.c.l.b16 %v332
        %v397 = vunpack.c.l.b16 %v333
        %v398 = vunpack.c.l.b16 %v334
        %v399 = vunpack.c.l.b16 %v335
        %v400 = vunpack.c.l.b16 %v336
        %v401 = vunpack.c.l.b16 %v337
        %v402 = vunpack.c.l.b16 %v338
        %v403 = vunpack.c.l.b16 %v339
        %v404 = vunpack.c.l.b16 %v340
        %v405 = vunpack.c.l.b16 %v341
        %v406 = vpack.c.b16 %v375, %v374
        %v407 = vpack.c.b16 %v377, %v376
        %v408 = vpack.c.b16 %v379, %v378
        %v409 = vpack.c.b16 %v381, %v380
        %v410 = vpack.c.b16 %v383, %v382
        %v411 = vpack.c.b16 %v385, %v384
        %v412 = vpack.c.b16 %v387, %v386
        %v413 = vpack.c.b16 %v389, %v388
        %v414 = vpack.c.b16 %v391, %v390
        %v415 = vpack.c.b16 %v393, %v392
        %v416 = vpack.c.b16 %v395, %v394
        %v417 = vpack.c.b16 %v397, %v396
        %v418 = vpack.c.b16 %v399, %v398
        %v419 = vpack.c.b16 %v401, %v400
        %v420 = vpack.c.b16 %v403, %v402
        %v421 = vpack.c.b16 %v405, %v404
        %438 = vmatpush.bf16.msra.mxu0 %v413
        %439 = vmatpush.bf16.msra.mxu0 %v412
        %440 = vmatpush.bf16.msra.mxu0 %v411
        %441 = vmatpush.bf16.msra.mxu0 %v410
        %442 = vmatpush.bf16.msra.mxu0 %v409
        %443 = vmatpush.bf16.msra.mxu0 %v408
        %444 = vmatpush.bf16.msra.mxu0 %v407
        %445 = vmatpush.bf16.msra.mxu0 %v406
        %446 = vmatmul.bf16.gmra.mxu0 %v308
        %v447 = vpop.f32.mrf.mxu0
        %v448 = vadd.f32 0.0, %v447
        %v449 = vpop.f32.mrf.mxu0
        %450 = vdwg.mxu0
        %451 = vmatpush.bf16.msra.mxu0 %v421
        %452 = vmatpush.bf16.msra.mxu0 %v420
        %453 = vmatpush.bf16.msra.mxu0 %v419
        %454 = vmatpush.bf16.msra.mxu0 %v418
        %455 = vmatpush.bf16.msra.mxu0 %v417
        %456 = vmatpush.bf16.msra.mxu0 %v416
        %457 = vmatpush.bf16.msra.mxu0 %v415
        %458 = vmatpush.bf16.msra.mxu0 %v414
        %459 = vmatmul.bf16.gmra.mxu0 %v309
        %v460 = vpop.f32.mrf.mxu0
        %v461 = vadd.f32 %v448, %v460
        %v462 = vpop.f32.mrf.mxu0
        %463 = vdwg.mxu0
        %v464 = vld [vmem:[#allocation7] sm:$0xf]
        %v465 = vpack.c.bf16 %v461, %v461
        %v466 = vld [vmem:[#allocation8] sm:$0xff]
        %vm467 = vcmask 64512
        %v469 = vsel %vm467, %v464, 0
        %vm471 = vcmask 1043456
        %v473 = vsel %vm471, %v465, 0
        %475 = vmatpush.bf16.msra.mxu0 0
        %476 = vmatpush.bf16.msra.mxu0 0
        %477 = vmatpush.bf16.msra.mxu0 0
        %478 = vmatpush.bf16.msra.mxu0 0
        %479 = vmatpush.bf16.msra.mxu0 0
        %480 = vmatpush.bf16.msra.mxu0 0
        %481 = vmatpush.bf16.msra.mxu0 0
        %482 = vmatpush.bf16.msra.mxu0 %v473
        %483 = vmatmul.bf16.gmra.mxu0 %v469
        %v484 = vpop.f32.mrf.mxu0
        %v485 = vadd.f32 %v466, %v484
        %v486 = vpop.f32.mrf.mxu0
        %487 = vdwg.mxu0
        %v488 = vmax.f32 %v485, 0.0
        %v489 = vpack.c.bf16 %v488, %v488
        %v490 = vld [vmem:[#allocation10] sm:$0xff]
        %v491 = vld [vmem:[#allocation10 + $0x8] sm:$0xff]
        %v492 = vld [vmem:[#allocation10 + $0x10] sm:$0xff]
        %v493 = vld [vmem:[#allocation10 + $0x18] sm:$0xff]
        %v494 = vld [vmem:[#allocation10 + $0x20] sm:$0xff]
        %v495 = vld [vmem:[#allocation10 + $0x28] sm:$0xff]
        %v496 = vld [vmem:[#allocation10 + $0x30] sm:$0xff]
        %v497 = vld [vmem:[#allocation10 + $0x38] sm:$0xff]
        %v498 = vld [vmem:[#allocation10 + $0x40] sm:$0xff]
        %v499 = vld [vmem:[#allocation10 + $0x48] sm:$0xff]
        %v500 = vld [vmem:[#allocation10 + $0x50] sm:$0xff]
        %v501 = vld [vmem:[#allocation10 + $0x58] sm:$0xff]
        %v502 = vld [vmem:[#allocation10 + $0x60] sm:$0xff]
        %v503 = vld [vmem:[#allocation10 + $0x68] sm:$0xff]
        %v504 = vld [vmem:[#allocation10 + $0x70] sm:$0xff]
        %v505 = vld [vmem:[#allocation10 + $0x78] sm:$0xff]
        %v522 = vunpack.c.l.b16 %v490
        %v523 = vunpack.c.h.b16 %v490
        %v524 = vunpack.c.l.b16 %v491
        %v525 = vunpack.c.h.b16 %v491
        %v526 = vunpack.c.l.b16 %v492
        %v527 = vunpack.c.h.b16 %v492
        %v528 = vunpack.c.l.b16 %v493
        %v529 = vunpack.c.h.b16 %v493
        %v530 = vunpack.c.l.b16 %v494
        %v531 = vunpack.c.h.b16 %v494
        %v532 = vunpack.c.l.b16 %v495
        %v533 = vunpack.c.h.b16 %v495
        %v534 = vunpack.c.l.b16 %v496
        %v535 = vunpack.c.h.b16 %v496
        %v536 = vunpack.c.l.b16 %v497
        %v537 = vunpack.c.h.b16 %v497
        %v538 = vunpack.c.l.b16 %v498
        %v539 = vunpack.c.h.b16 %v498
        %v540 = vunpack.c.l.b16 %v499
        %v541 = vunpack.c.h.b16 %v499
        %v542 = vunpack.c.l.b16 %v500
        %v543 = vunpack.c.h.b16 %v500
        %v544 = vunpack.c.l.b16 %v501
        %v545 = vunpack.c.h.b16 %v501
        %v546 = vunpack.c.l.b16 %v502
        %v547 = vunpack.c.h.b16 %v502
        %v548 = vunpack.c.l.b16 %v503
        %v549 = vunpack.c.h.b16 %v503
        %v550 = vunpack.c.l.b16 %v504
        %v551 = vunpack.c.h.b16 %v504
        %v552 = vunpack.c.l.b16 %v505
        %v553 = vunpack.c.h.b16 %v505
        %v554 = vpack.c.b16 %v524, %v522
        %v555 = vpack.c.b16 %v525, %v523
        %v556 = vpack.c.b16 %v528, %v526
        %v557 = vpack.c.b16 %v529, %v527
        %v558 = vpack.c.b16 %v532, %v530
        %v559 = vpack.c.b16 %v533, %v531
        %v560 = vpack.c.b16 %v536, %v534
        %v561 = vpack.c.b16 %v537, %v535
        %v562 = vpack.c.b16 %v540, %v538
        %v563 = vpack.c.b16 %v541, %v539
        %v564 = vpack.c.b16 %v544, %v542
        %v565 = vpack.c.b16 %v545, %v543
        %v566 = vpack.c.b16 %v548, %v546
        %v567 = vpack.c.b16 %v549, %v547
        %v568 = vpack.c.b16 %v552, %v550
        %v569 = vpack.c.b16 %v553, %v551
        %586 = vmatpush.bf16.msra.mxu0 %v568
        %587 = vmatpush.bf16.msra.mxu0 %v566
        %588 = vmatpush.bf16.msra.mxu0 %v564
        %589 = vmatpush.bf16.msra.mxu0 %v562
        %590 = vmatpush.bf16.msra.mxu0 %v560
        %591 = vmatpush.bf16.msra.mxu0 %v558
        %592 = vmatpush.bf16.msra.mxu0 %v556
        %593 = vmatpush.bf16.msra.mxu0 %v554
        %594 = vmatmul.bf16.gmra.mxu0 %v489
        %v595 = vpop.f32.mrf.mxu0
        %v596 = vadd.f32 0.0, %v595
        %v597 = vpop.f32.mrf.mxu0
        %598 = vdwg.mxu0
        %599 = vmatpush.bf16.msra.mxu0 %v569
        %600 = vmatpush.bf16.msra.mxu0 %v567
        %601 = vmatpush.bf16.msra.mxu0 %v565
        %602 = vmatpush.bf16.msra.mxu0 %v563
        %603 = vmatpush.bf16.msra.mxu0 %v561
        %604 = vmatpush.bf16.msra.mxu0 %v559
        %605 = vmatpush.bf16.msra.mxu0 %v557
        %606 = vmatpush.bf16.msra.mxu0 %v555
        %607 = vmatmul.bf16.gmra.mxu0 %v489
        %v608 = vpop.f32.mrf.mxu0
        %v609 = vadd.f32 0.0, %v608
        %v610 = vpop.f32.mrf.mxu0
        %611 = vdwg.mxu0
        %612 = vst [vmem:[%s304] sm:$0xff] %v306
        %613 = vst [vmem:[%s304 + $0x8] sm:$0xff] %v307
        %614 = vst [vmem:[%s304 + $0x10] sm:$0xff] %v596
        %615 = vst [vmem:[%s304 + $0x18] sm:$0xff] %v609
        %s616 = sand.u32 %s142, 1
        %s617 = scalar_lea.sflag [#allocation4], %s616
        %s618 = sand.u32 %s142, 1
        %s619 = smul.addr %s618, 32
        %s620 = scalar_lea.vmem [#allocation11], %s619
        // Predicated region
        $region61: #{tpu_custom_call.1} parent=39 // pred_check
          %p621 = pneg %p152
        $region62: #{tpu_custom_call.1} parent=39 // pred_check_branch
          %623 = sbr.rel (%p621) target = $region64
        $region63: #{tpu_custom_call.1} parent=39 // pred_region
          %625 = vsyncadd %s617, 0
          %s626 = smul.addr %s24, 4
          %s627 = smul.addr %s626, 8
          %s628 = scalar_lea.hbm %s5, %s627
          %s629 = sshll.u32 %s620, 4
          %s630 = int_to_ptr.vmem [resolvable:$true] %s629
          %s631 = sshll.u32 %s628, 4
          %s632 = int_to_ptr.hbm [resolvable:$true] %s631
          %637 = dma.vmem_to_hbm [thread:$0]  %s630, 512, %s632, %s617, 256, 256, 16
        $region64: #{tpu_custom_call.1} parent=39 // pred_fallthru
          _
      $region40: #{tpu_custom_call.1} parent=5 // pred_fallthru
        _
      %p638 = scmp.le.s32.totalorder 2, %s19
      // Predicated region
      $region65: #{tpu_custom_call.1} parent=5 // pred_check
        %p639 = pneg %p638
      $region66: #{tpu_custom_call.1} parent=5 // pred_check_branch
        %641 = sbr.rel (%p639) target = $region68
      $region67: #{tpu_custom_call.1} parent=5 // pred_region
        %s642 = ssub.s32 %s19, 2
        // Predicated region
        $region69: #{tpu_custom_call.1} parent=67 // pred_check
          %p643 = pneg %p158
        $region70: #{tpu_custom_call.1} parent=67 // pred_check_branch
          %645 = sbr.rel (%p643) target = $region72
        $region71: #{tpu_custom_call.1} parent=67 // pred_region
          %s646 = sand.u32 %s143, 1
          %s647 = scalar_lea.sflag [#allocation4], %s646
          %s648 = sand.u32 %s143, 1
          %s649 = smul.addr %s648, 32
          %s650 = scalar_lea.vmem [#allocation11], %s649
          %652 = dma.done %s647, 512
        $region72: #{tpu_custom_call.1} parent=67 // pred_fallthru
          _
      $region68: #{tpu_custom_call.1} parent=5 // pred_fallthru
        _
    $region6: #{tpu_custom_call.1} parent=1 // loop_footer
      %s23 = sadd.s32 1, %s19
    $region7: #{tpu_custom_call.1} parent=1 // loop_footer_branch
      %18 = sbr.rel target = $region3
    $region8: #{tpu_custom_call.1} parent=1 // loop_exit
      _
    %653 = vsyncpa [#allocation3], 1
    %s654 = scalar_lea.sflag [#allocation3], 1
    %655 = vsyncpa %s654, 1
    %656 = vsyncpa [#allocation6], 1
    %657 = vsyncpa [#allocation9], 1
    %658 = vsyncpa [#allocation4], 1
    %s659 = scalar_lea.sflag [#allocation4], 1
    %660 = vsyncpa %s659, 1

// kernel: tpu_custom_call.1
$region0: #{tpu_custom_call.1}
  #allocation0 [shape = 'u32[]', space=smem, size = 0x4, offset = 0x4, fixed_abs, tag = 'smem constant byte address 0x4 - core index']
  #allocation1 [shape = 'u32[72,128]{1,0:T(1,128)}', space=vmem, size = 0x9000, scoped, tag = 'internal scratch']
  %s0 = inlined_call_operand.hbm [shape: f32[2,8,256], index: 0, kind: input, shape index: {}]
  %s1 = inlined_call_operand.hbm [shape: bf16[256,128], index: 1, kind: input, shape index: {}]
  %s2 = inlined_call_operand.hbm [shape: bf16[8,8], index: 2, kind: input, shape index: {}]
  %s3 = inlined_call_operand.hbm [shape: f32[8,128], index: 3, kind: input, shape index: {}]
  %s4 = inlined_call_operand.hbm [shape: bf16[128,256], index: 4, kind: input, shape index: {}]
  %s5 = inlined_call_operand.hbm [shape: f32[2,16,256], index: 5, kind: output, shape index: {}]
  %s6 = sld [smem:[#allocation0]]
  $region73: #{tpu_custom_call.1} parent=0
    _
  %s8 = ssub.s32 1, %s6
  %s9 = scalar_select 0, %s8, %s6
  $region1: #{tpu_custom_call.1} parent=0
    #allocation2 [shape = 'u8[16384]{0}', space=vmem, size = 0x4000, scoped, tag = 'input window, operand 0']
    #allocation3 [shape = 's32[2]{0}', space=sflag, size = 0x8, scoped, tag = 'scoped memory for tpu_custom_call.1']
    #allocation4 [shape = 's32[2]{0}', space=sflag, size = 0x8, scoped, tag = 'scoped memory for tpu_custom_call.1']
    #allocation5 [shape = 'u8[65536]{0}', space=vmem, size = 0x10000, scoped, tag = 'input window, operand 1, single buffered']
    #allocation6 [shape = 's32[1]{0}', space=sflag, size = 0x4, scoped, tag = 'scoped memory for tpu_custom_call.1']
    #allocation7 [shape = 'u8[2048]{0}', space=vmem, size = 0x800, scoped, tag = 'input window, operand 2, single buffered']
    #allocation8 [shape = 'u8[4096]{0}', space=vmem, size = 0x1000, scoped, tag = 'input window, operand 3, single buffered']
    #allocation9 [shape = 's32[1]{0}', space=sflag, size = 0x4, scoped, tag = 'scoped memory for tpu_custom_call.1']
    #allocation10 [shape = 'u8[65536]{0}', space=vmem, size = 0x10000, scoped, tag = 'input window, operand 4, single buffered']
    #allocation11 [shape = 'u8[32768]{0}', space=vmem, size = 0x8000, scoped, tag = 'output window, operand 0']
    %10 = vsyncpa [#allocation3], 0
    %s11 = scalar_lea.sflag [#allocation3], 1
    %12 = vsyncpa %s11, 0
    %13 = vsyncpa [#allocation6], 0
    %14 = vsyncpa [#allocation9], 0
    %15 = vsyncpa [#allocation4], 0
    %s16 = scalar_lea.sflag [#allocation4], 1
    %17 = vsyncpa %s16, 0
    loop: start=0, step=1, limit=4
    $region2: #{tpu_custom_call.1} parent=1 // loop_pre_header
      _
    $region3: #{tpu_custom_call.1} parent=1 // loop_header
      %s19 = sphi 0, %s23
      %p20 = scmp.ge.s32.totalorder %s19, 4
      %s29 = sphi 0, %s31
      %s32 = sphi 0, %s29
      %s33 = sphi 0, %s32
      %s49 = sphi 0, %s33
      %s53 = sphi 0, %s53
      %s55 = sphi 0, %s53
      %s56 = sphi 0, %s55
      %s70 = sphi 0, %s56
      %s74 = sphi 0, %s74
      %s76 = sphi 0, %s74
      %s77 = sphi 0, %s76
      %s91 = sphi 0, %s77
      %s95 = sphi 0, %s95
      %s97 = sphi 0, %s95
      %s98 = sphi 0, %s97
      %s112 = sphi 0, %s98
      %s116 = sphi 0, %s116
      %s118 = sphi 0, %s116
      %s119 = sphi 0, %s118
      %s133 = sphi 0, %s119
      %s139 = sphi 0, %s141
      %s142 = sphi 0, %s139
      %s143 = sphi 0, %s142
      %s159 = sphi 0, %s143
    $region4: #{tpu_custom_call.1} parent=1 // loop_header_branch
      %22 = sbr.rel (%p20) target = $region8
    $region5: #{tpu_custom_call.1} parent=1 // loop_body
      %s24 = ssub.s32 %s19, 1
      %s25 = ssub.s32 %s19, 2
      %s26 = sadd.s32 %s19, 1
      %s27 = ssub.s32 %s19, %s26
      %p28 = scmp.eq.s32.totalorder %s27, 0
      %s30 = sadd.s32 %s29, 1
      %s31 = scalar_select %p28, %s29, %s30
      %p34 = pneg %p28
      %p35 = scmp.eq.s32.totalorder %s19, 1
      %p36 = por %p34, %p35
      %p37 = scmp.ne.s32.totalorder %s29, %s32
      %p38 = scmp.eq.s32.totalorder %s19, 0
      %p39 = por %p37, %p38
      %p40 = scmp.ne.s32.totalorder %s29, %s32
      %p41 = scmp.eq.s32.totalorder %s24, 1
      %p42 = por %p40, %p41
      %p43 = scmp.ne.s32.totalorder %s32, %s33
      %p44 = scmp.eq.s32.totalorder %s24, 0
      %p45 = por %p43, %p44
      %p46 = scmp.ne.s32.totalorder %s32, %s33
      %p47 = scmp.eq.s32.totalorder %s25, 1
      %p48 = por %p46, %p47
      %p50 = scmp.ne.s32.totalorder %s33, %s49
      %p51 = scmp.eq.s32.totalorder %s25, 0
      %p52 = por %p50, %p51
      %s54 = sadd.s32 %s53, 1
      %p57 = scmp.eq.s32.totalorder %s19, 1
      %p58 = scmp.ne.s32.totalorder %s53, %s55
      %p59 = scmp.eq.s32.totalorder %s19, 0
      %p60 = por %p58, %p59
      %p61 = scmp.ne.s32.totalorder %s53, %s55
      %p62 = scmp.eq.s32.totalorder %s24, 1
      %p63 = por %p61, %p62
      %p64 = scmp.ne.s32.totalorder %s55, %s56
      %p65 = scmp.eq.s32.totalorder %s24, 0
      %p66 = por %p64, %p65
      %p67 = scmp.ne.s32.totalorder %s55, %s56
      %p68 = scmp.eq.s32.totalorder %s25, 1
      %p69 = por %p67, %p68
      %p71 = scmp.ne.s32.totalorder %s56, %s70
      %p72 = scmp.eq.s32.totalorder %s25, 0
      %p73 = por %p71, %p72
      %s75 = sadd.s32 %s74, 1
      %p78 = scmp.eq.s32.totalorder %s19, 1
      %p79 = scmp.ne.s32.totalorder %s74, %s76
      %p80 = scmp.eq.s32.totalorder %s19, 0
      %p81 = por %p79, %p80
      %p82 = scmp.ne.s32.totalorder %s74, %s76
      %p83 = scmp.eq.s32.totalorder %s24, 1
      %p84 = por %p82, %p83
      %p85 = scmp.ne.s32.totalorder %s76, %s77
      %p86 = scmp.eq.s32.totalorder %s24, 0
      %p87 = por %p85, %p86
      %p88 = scmp.ne.s32.totalorder %s76, %s77
      %p89 = scmp.eq.s32.totalorder %s25, 1
      %p90 = por %p88, %p89
      %p92 = scmp.ne.s32.totalorder %s77, %s91
      %p93 = scmp.eq.s32.totalorder %s25, 0
      %p94 = por %p92, %p93
      %s96 = sadd.s32 %s95, 1
      %p99 = scmp.eq.s32.totalorder %s19, 1
      %p100 = scmp.ne.s32.totalorder %s95, %s97
      %p101 = scmp.eq.s32.totalorder %s19, 0
      %p102 = por %p100, %p101
      %p103 = scmp.ne.s32.totalorder %s95, %s97
      %p104 = scmp.eq.s32.totalorder %s24, 1
      %p105 = por %p103, %p104
      %p106 = scmp.ne.s32.totalorder %s97, %s98
      %p107 = scmp.eq.s32.totalorder %s24, 0
      %p108 = por %p106, %p107
      %p109 = scmp.ne.s32.totalorder %s97, %s98
      %p110 = scmp.eq.s32.totalorder %s25, 1
      %p111 = por %p109, %p110
      %p113 = scmp.ne.s32.totalorder %s98, %s112
      %p114 = scmp.eq.s32.totalorder %s25, 0
      %p115 = por %p113, %p114
      %s117 = sadd.s32 %s116, 1
      %p120 = scmp.eq.s32.totalorder %s19, 1
      %p121 = scmp.ne.s32.totalorder %s116, %s118
      %p122 = scmp.eq.s32.totalorder %s19, 0
      %p123 = por %p121, %p122
      %p124 = scmp.ne.s32.totalorder %s116, %s118
      %p125 = scmp.eq.s32.totalorder %s24, 1
      %p126 = por %p124, %p125
      %p127 = scmp.ne.s32.totalorder %s118, %s119
      %p128 = scmp.eq.s32.totalorder %s24, 0
      %p129 = por %p127, %p128
      %p130 = scmp.ne.s32.totalorder %s118, %s119
      %p131 = scmp.eq.s32.totalorder %s25, 1
      %p132 = por %p130, %p131
      %p134 = scmp.ne.s32.totalorder %s119, %s133
      %p135 = scmp.eq.s32.totalorder %s25, 0
      %p136 = por %p134, %p135
      %s137 = ssub.s32 %s19, %s26
      %p138 = scmp.eq.s32.totalorder %s137, 0
      %s140 = sadd.s32 %s139, 1
      %s141 = scalar_select %p138, %s139, %s140
      %p144 = pneg %p138
      %p145 = scmp.eq.s32.totalorder %s19, 1
      %p146 = por %p144, %p145
      %p147 = scmp.ne.s32.totalorder %s139, %s142
      %p148 = scmp.eq.s32.totalorder %s19, 0
      %p149 = por %p147, %p148
      %p150 = scmp.ne.s32.totalorder %s139, %s142
      %p151 = scmp.eq.s32.totalorder %s24, 1
      %p152 = por %p150, %p151
      %p153 = scmp.ne.s32.totalorder %s142, %s143
      %p154 = scmp.eq.s32.totalorder %s24, 0
      %p155 = por %p153, %p154
      %p156 = scmp.ne.s32.totalorder %s142, %s143
      %p157 = scmp.eq.s32.totalorder %s25, 1
      %p158 = por %p156, %p157
      %p160 = scmp.ne.s32.totalorder %s143, %s159
      %p161 = scmp.eq.s32.totalorder %s25, 0
      %p162 = por %p160, %p161
      %p163 = scmp.le.s32.totalorder 1, %s19
      %p164 = scmp.lt.s32.totalorder %s19, 3
      %p165 = pnand %p163, %p164
      %p166 = pneg %p165
      // Predicated region
      $region9: #{tpu_custom_call.1} parent=5 // pred_check
        _
      $region10: #{tpu_custom_call.1} parent=5 // pred_check_branch
        %168 = sbr.rel (%p165) target = $region12
      $region11: #{tpu_custom_call.1} parent=5 // pred_region
        %s169 = ssub.s32 %s19, 1
        // Predicated region
        $region13: #{tpu_custom_call.1} parent=11 // pred_check
          %p170 = pneg %p66
        $region14: #{tpu_custom_call.1} parent=11 // pred_check_branch
          %172 = sbr.rel (%p170) target = $region16
        $region15: #{tpu_custom_call.1} parent=11 // pred_region
          %174 = vsyncadd [#allocation6], 0
          %s175 = sshll.u32 %s1, 4
          %s176 = int_to_ptr.hbm [resolvable:$true] %s175
          %s177 = sshll.u32 [#allocation5], 4
          %s178 = int_to_ptr.vmem [resolvable:$true] %s177
          %183 = dma.hbm_to_vmem [thread:$0]  %s176, 2048, %s178, [#allocation6], 64, 64, 4
        $region16: #{tpu_custom_call.1} parent=11 // pred_fallthru
          _
        // Predicated region
        $region17: #{tpu_custom_call.1} parent=11 // pred_check
          %p184 = pneg %p87
        $region18: #{tpu_custom_call.1} parent=11 // pred_check_branch
          %186 = sbr.rel (%p184) target = $region20
        $region19: #{tpu_custom_call.1} parent=11 // pred_region
          %188 = vsyncadd [#allocation6], 0
          %s190 = sshll.u32 %s2, 4
          %s191 = int_to_ptr.hbm [resolvable:$true] %s190
          %s192 = sshll.u32 [#allocation7], 4
          %s193 = int_to_ptr.vmem [resolvable:$true] %s192
          %195 = dma.hbm_to_vmem [thread:$0]  %s191, 64, %s193, [#allocation6]
        $region20: #{tpu_custom_call.1} parent=11 // pred_fallthru
          _
        // Predicated region
        $region21: #{tpu_custom_call.1} parent=11 // pred_check
          %p196 = pneg %p108
        $region22: #{tpu_custom_call.1} parent=11 // pred_check_branch
          %198 = sbr.rel (%p196) target = $region24
        $region23: #{tpu_custom_call.1} parent=11 // pred_region
          %200 = vsyncadd [#allocation9], 0
          %s202 = sshll.u32 %s3, 4
          %s203 = int_to_ptr.hbm [resolvable:$true] %s202
          %s204 = sshll.u32 [#allocation8], 4
          %s205 = int_to_ptr.vmem [resolvable:$true] %s204
          %207 = dma.hbm_to_vmem [thread:$0]  %s203, 128, %s205, [#allocation9]
        $region24: #{tpu_custom_call.1} parent=11 // pred_fallthru
          _
        // Predicated region
        $region25: #{tpu_custom_call.1} parent=11 // pred_check
          %p208 = pneg %p129
        $region26: #{tpu_custom_call.1} parent=11 // pred_check_branch
          %210 = sbr.rel (%p208) target = $region28
        $region27: #{tpu_custom_call.1} parent=11 // pred_region
          %212 = vsyncadd [#allocation9], 0
          %s213 = sshll.u32 %s4, 4
          %s214 = int_to_ptr.hbm [resolvable:$true] %s213
          %s215 = sshll.u32 [#allocation10], 4
          %s216 = int_to_ptr.vmem [resolvable:$true] %s215
          %221 = dma.hbm_to_vmem [thread:$0]  %s214, 2048, %s216, [#allocation9], 128, 128, 8
        $region28: #{tpu_custom_call.1} parent=11 // pred_fallthru
          _
      $region12: #{tpu_custom_call.1} parent=5 // pred_fallthru
        _
      %p222 = scmp.lt.s32.totalorder %s19, 2
      // Predicated region
      $region29: #{tpu_custom_call.1} parent=5 // pred_check
        %p223 = pneg %p222
      $region30: #{tpu_custom_call.1} parent=5 // pred_check_branch
        %225 = sbr.rel (%p223) target = $region32
      $region31: #{tpu_custom_call.1} parent=5 // pred_region
        // Predicated region
        $region33: #{tpu_custom_call.1} parent=31 // pred_check
          %p226 = pneg %p39
        $region34: #{tpu_custom_call.1} parent=31 // pred_check_branch
          %228 = sbr.rel (%p226) target = $region36
        $region35: #{tpu_custom_call.1} parent=31 // pred_region
          %s229 = sand.u32 %s29, 1
          %s230 = scalar_lea.sflag [#allocation3], %s229
          %s231 = sand.u32 %s29, 1
          %s232 = smul.addr %s231, 16
          %s233 = scalar_lea.vmem [#allocation2], %s232
          %235 = vsyncadd %s230, 0
          %s236 = smul.addr %s19, 2
          %s237 = smul.addr %s236, 8
          %s238 = scalar_lea.hbm %s0, %s237
          %s240 = sshll.u32 %s238, 4
          %s241 = int_to_ptr.hbm [resolvable:$true] %s240
          %s242 = sshll.u32 %s233, 4
          %s243 = int_to_ptr.vmem [resolvable:$true] %s242
          %245 = dma.hbm_to_vmem [thread:$0]  %s241, 256, %s243, %s230
        $region36: #{tpu_custom_call.1} parent=31 // pred_fallthru
          _
      $region32: #{tpu_custom_call.1} parent=5 // pred_fallthru
        _
      %p246 = scmp.le.s32.totalorder 1, %s19
      %p247 = scmp.lt.s32.totalorder %s19, 3
      %p248 = pnand %p246, %p247
      %p249 = pneg %p248
      // Predicated region
      $region37: #{tpu_custom_call.1} parent=5 // pred_check
        _
      $region38: #{tpu_custom_call.1} parent=5 // pred_check_branch
        %251 = sbr.rel (%p248) target = $region40
      $region39: #{tpu_custom_call.1} parent=5 // pred_region
        %s252 = ssub.s32 %s19, 1
        %s253 = sand.u32 %s32, 1
        %s254 = scalar_lea.sflag [#allocation3], %s253
        %s255 = sand.u32 %s32, 1
        %s256 = smul.addr %s255, 16
        %s257 = scalar_lea.vmem [#allocation2], %s256
        // Predicated region
        $region41: #{tpu_custom_call.1} parent=39 // pred_check
          %p258 = pneg %p45
        $region42: #{tpu_custom_call.1} parent=39 // pred_check_branch
          %260 = sbr.rel (%p258) target = $region44
        $region43: #{tpu_custom_call.1} parent=39 // pred_region
          %262 = dma.done %s254, 256
        $region44: #{tpu_custom_call.1} parent=39 // pred_fallthru
          _
        // Predicated region
        $region45: #{tpu_custom_call.1} parent=39 // pred_check
          %p263 = pneg %p66
        $region46: #{tpu_custom_call.1} parent=39 // pred_check_branch
          %265 = sbr.rel (%p263) target = $region48
        $region47: #{tpu_custom_call.1} parent=39 // pred_region
          %267 = dma.done [#allocation6], 2048
        $region48: #{tpu_custom_call.1} parent=39 // pred_fallthru
          _
        // Predicated region
        $region49: #{tpu_custom_call.1} parent=39 // pred_check
          %p268 = pneg %p87
        $region50: #{tpu_custom_call.1} parent=39 // pred_check_branch
          %270 = sbr.rel (%p268) target = $region52
        $region51: #{tpu_custom_call.1} parent=39 // pred_region
          %272 = dma.done [#allocation6], 64
        $region52: #{tpu_custom_call.1} parent=39 // pred_fallthru
          _
        // Predicated region
        $region53: #{tpu_custom_call.1} parent=39 // pred_check
          %p273 = pneg %p108
        $region54: #{tpu_custom_call.1} parent=39 // pred_check_branch
          %275 = sbr.rel (%p273) target = $region56
        $region55: #{tpu_custom_call.1} parent=39 // pred_region
          %277 = dma.done [#allocation9], 128
        $region56: #{tpu_custom_call.1} parent=39 // pred_fallthru
          _
        // Predicated region
        $region57: #{tpu_custom_call.1} parent=39 // pred_check
          %p278 = pneg %p129
        $region58: #{tpu_custom_call.1} parent=39 // pred_check_branch
          %280 = sbr.rel (%p278) target = $region60
        $region59: #{tpu_custom_call.1} parent=39 // pred_region
          %282 = dma.done [#allocation9], 2048
        $region60: #{tpu_custom_call.1} parent=39 // pred_fallthru
          _
        %s283 = sand.u32 %s32, 1
        %s284 = scalar_lea.sflag [#allocation3], %s283
        %s285 = sand.u32 %s32, 1
        %s286 = smul.addr %s285, 16
        %s287 = scalar_lea.vmem [#allocation2], %s286
        %p288 = pneg %p45
        %p289 = pneg %p42
        %p290 = pneg %p66
        %p291 = pneg %p63
        %p292 = pneg %p87
        %p293 = pneg %p84
        %p294 = pneg %p108
        %p295 = pneg %p105
        %p296 = pneg %p129
        %p297 = pneg %p126
        %p298 = pneg %p155
        %p299 = pneg %p152
        %s300 = sand.u32 %s142, 1
        %s301 = scalar_lea.sflag [#allocation4], %s300
        %s302 = sand.u32 %s142, 1
        %s303 = smul.addr %s302, 32
        %s304 = scalar_lea.vmem [#allocation11], %s303
        %v306 = vld [vmem:[%s257] sm:$0xff]
        %v307 = vld [vmem:[%s257 + $0x8] sm:$0xff]
        %v308 = vpack.c.bf16 %v306, %v306
        %v309 = vpack.c.bf16 %v307, %v307
        %v310 = vld [vmem:[#allocation5] sm:$0xf]
        %v311 = vld [vmem:[#allocation5 + $0x4] sm:$0xf]
        %v312 = vld [vmem:[#allocation5 + $0x8] sm:$0xf]
        %v313 = vld [vmem:[#allocation5 + $0xc] sm:$0xf]
        %v314 = vld [vmem:[#allocation5 + $0x10] sm:$0xf]
        %v315 = vld [vmem:[#allocation5 + $0x14] sm:$0xf]
        %v316 = vld [vmem:[#allocation5 + $0x18] sm:$0xf]
        %v317 = vld [vmem:[#allocation5 + $0x1c] sm:$0xf]
        %v318 = vld [vmem:[#allocation5 + $0x20] sm:$0xf]
        %v319 = vld [vmem:[#allocation5 + $0x24] sm:$0xf]
        %v320 = vld [vmem:[#allocation5 + $0x28] sm:$0xf]
        %v321 = vld [vmem:[#allocation5 + $0x2c] sm:$0xf]
        %v322 = vld [vmem:[#allocation5 + $0x30] sm:$0xf]
        %v323 = vld [vmem:[#allocation5 + $0x34] sm:$0xf]
        %v324 = vld [vmem:[#allocation5 + $0x38] sm:$0xf]
        %v325 = vld [vmem:[#allocation5 + $0x3c] sm:$0xf]
        %v326 = vld [vmem:[#allocation5 + $0x40] sm:$0xf]
        %v327 = vld [vmem:[#allocation5 + $0x44] sm:$0xf]
        %v328 = vld [vmem:[#allocation5 + $0x48] sm:$0xf]
        %v329 = vld [vmem:[#allocation5 + $0x4c] sm:$0xf]
        %v330 = vld [vmem:[#allocation5 + $0x50] sm:$0xf]
        %v331 = vld [vmem:[#allocation5 + $0x54] sm:$0xf]
        %v332 = vld [vmem:[#allocation5 + $0x58] sm:$0xf]
        %v333 = vld [vmem:[#allocation5 + $0x5c] sm:$0xf]
        %v334 = vld [vmem:[#allocation5 + $0x60] sm:$0xf]
        %v335 = vld [vmem:[#allocation5 + $0x64] sm:$0xf]
        %v336 = vld [vmem:[#allocation5 + $0x68] sm:$0xf]
        %v337 = vld [vmem:[#allocation5 + $0x6c] sm:$0xf]
        %v338 = vld [vmem:[#allocation5 + $0x70] sm:$0xf]
        %v339 = vld [vmem:[#allocation5 + $0x74] sm:$0xf]
        %v340 = vld [vmem:[#allocation5 + $0x78] sm:$0xf]
        %v341 = vld [vmem:[#allocation5 + $0x7c] sm:$0xf]
        %v374 = vunpack.c.l.b16 %v310
        %v375 = vunpack.c.l.b16 %v311
        %v376 = vunpack.c.l.b16 %v312
        %v377 = vunpack.c.l.b16 %v313
        %v378 = vunpack.c.l.b16 %v314
        %v379 = vunpack.c.l.b16 %v315
        %v380 = vunpack.c.l.b16 %v316
        %v381 = vunpack.c.l.b16 %v317
        %v382 = vunpack.c.l.b16 %v318
        %v383 = vunpack.c.l.b16 %v319
        %v384 = vunpack.c.l.b16 %v320
        %v385 = vunpack.c.l.b16 %v321
        %v386 = vunpack.c.l.b16 %v322
        %v387 = vunpack.c.l.b16 %v323
        %v388 = vunpack.c.l.b16 %v324
        %v389 = vunpack.c.l.b16 %v325
        %v390 = vunpack.c.l.b16 %v326
        %v391 = vunpack.c.l.b16 %v327
        %v392 = vunpack.c.l.b16 %v328
        %v393 = vunpack.c.l.b16 %v329
        %v394 = vunpack.c.l.b16 %v330
        %v395 = vunpack.c.l.b16 %v331
        %v396 = vunpack.c.l.b16 %v332
        %v397 = vunpack.c.l.b16 %v333
        %v398 = vunpack.c.l.b16 %v334
        %v399 = vunpack.c.l.b16 %v335
        %v400 = vunpack.c.l.b16 %v336
        %v401 = vunpack.c.l.b16 %v337
        %v402 = vunpack.c.l.b16 %v338
        %v403 = vunpack.c.l.b16 %v339
        %v404 = vunpack.c.l.b16 %v340
        %v405 = vunpack.c.l.b16 %v341
        %v406 = vpack.c.b16 %v375, %v374
        %v407 = vpack.c.b16 %v377, %v376
        %v408 = vpack.c.b16 %v379, %v378
        %v409 = vpack.c.b16 %v381, %v380
        %v410 = vpack.c.b16 %v383, %v382
        %v411 = vpack.c.b16 %v385, %v384
        %v412 = vpack.c.b16 %v387, %v386
        %v413 = vpack.c.b16 %v389, %v388
        %v414 = vpack.c.b16 %v391, %v390
        %v415 = vpack.c.b16 %v393, %v392
        %v416 = vpack.c.b16 %v395, %v394
        %v417 = vpack.c.b16 %v397, %v396
        %v418 = vpack.c.b16 %v399, %v398
        %v419 = vpack.c.b16 %v401, %v400
        %v420 = vpack.c.b16 %v403, %v402
        %v421 = vpack.c.b16 %v405, %v404
        %438 = vmatpush.bf16.msra.mxu0 %v413
        %439 = vmatpush.bf16.msra.mxu0 %v412
        %440 = vmatpush.bf16.msra.mxu0 %v411
        %441 = vmatpush.bf16.msra.mxu0 %v410
        %442 = vmatpush.bf16.msra.mxu0 %v409
        %443 = vmatpush.bf16.msra.mxu0 %v408
        %444 = vmatpush.bf16.msra.mxu0 %v407
        %445 = vmatpush.bf16.msra.mxu0 %v406
        %446 = vmatmul.bf16.gmra.mxu0 %v308
        %v447 = vpop.f32.mrf.mxu0
        %v448 = vadd.f32 0.0, %v447
        %v449 = vpop.f32.mrf.mxu0
        %450 = vdwg.mxu0
        %451 = vmatpush.bf16.msra.mxu0 %v421
        %452 = vmatpush.bf16.msra.mxu0 %v420
        %453 = vmatpush.bf16.msra.mxu0 %v419
        %454 = vmatpush.bf16.msra.mxu0 %v418
        %455 = vmatpush.bf16.msra.mxu0 %v417
        %456 = vmatpush.bf16.msra.mxu0 %v416
        %457 = vmatpush.bf16.msra.mxu0 %v415
        %458 = vmatpush.bf16.msra.mxu0 %v414
        %459 = vmatmul.bf16.gmra.mxu0 %v309
        %v460 = vpop.f32.mrf.mxu0
        %v461 = vadd.f32 %v448, %v460
        %v462 = vpop.f32.mrf.mxu0
        %463 = vdwg.mxu0
        %v464 = vld [vmem:[#allocation7] sm:$0xf]
        %v465 = vpack.c.bf16 %v461, %v461
        %v466 = vld [vmem:[#allocation8] sm:$0xff]
        %vm467 = vcmask 64512
        %v469 = vsel %vm467, %v464, 0
        %vm471 = vcmask 1043456
        %v473 = vsel %vm471, %v465, 0
        %475 = vmatpush.bf16.msra.mxu0 0
        %476 = vmatpush.bf16.msra.mxu0 0
        %477 = vmatpush.bf16.msra.mxu0 0
        %478 = vmatpush.bf16.msra.mxu0 0
        %479 = vmatpush.bf16.msra.mxu0 0
        %480 = vmatpush.bf16.msra.mxu0 0
        %481 = vmatpush.bf16.msra.mxu0 0
        %482 = vmatpush.bf16.msra.mxu0 %v473
        %483 = vmatmul.bf16.gmra.mxu0 %v469
        %v484 = vpop.f32.mrf.mxu0
        %v485 = vadd.f32 %v466, %v484
        %v486 = vpop.f32.mrf.mxu0
        %487 = vdwg.mxu0
        %v488 = vmax.f32 %v485, 0.0
        %v489 = vpack.c.bf16 %v488, %v488
        %v490 = vld [vmem:[#allocation10] sm:$0xff]
        %v491 = vld [vmem:[#allocation10 + $0x8] sm:$0xff]
        %v492 = vld [vmem:[#allocation10 + $0x10] sm:$0xff]
        %v493 = vld [vmem:[#allocation10 + $0x18] sm:$0xff]
        %v494 = vld [vmem:[#allocation10 + $0x20] sm:$0xff]
        %v495 = vld [vmem:[#allocation10 + $0x28] sm:$0xff]
        %v496 = vld [vmem:[#allocation10 + $0x30] sm:$0xff]
        %v497 = vld [vmem:[#allocation10 + $0x38] sm:$0xff]
        %v498 = vld [vmem:[#allocation10 + $0x40] sm:$0xff]
        %v499 = vld [vmem:[#allocation10 + $0x48] sm:$0xff]
        %v500 = vld [vmem:[#allocation10 + $0x50] sm:$0xff]
        %v501 = vld [vmem:[#allocation10 + $0x58] sm:$0xff]
        %v502 = vld [vmem:[#allocation10 + $0x60] sm:$0xff]
        %v503 = vld [vmem:[#allocation10 + $0x68] sm:$0xff]
        %v504 = vld [vmem:[#allocation10 + $0x70] sm:$0xff]
        %v505 = vld [vmem:[#allocation10 + $0x78] sm:$0xff]
        %v522 = vunpack.c.l.b16 %v490
        %v523 = vunpack.c.h.b16 %v490
        %v524 = vunpack.c.l.b16 %v491
        %v525 = vunpack.c.h.b16 %v491
        %v526 = vunpack.c.l.b16 %v492
        %v527 = vunpack.c.h.b16 %v492
        %v528 = vunpack.c.l.b16 %v493
        %v529 = vunpack.c.h.b16 %v493
        %v530 = vunpack.c.l.b16 %v494
        %v531 = vunpack.c.h.b16 %v494
        %v532 = vunpack.c.l.b16 %v495
        %v533 = vunpack.c.h.b16 %v495
        %v534 = vunpack.c.l.b16 %v496
        %v535 = vunpack.c.h.b16 %v496
        %v536 = vunpack.c.l.b16 %v497
        %v537 = vunpack.c.h.b16 %v497
        %v538 = vunpack.c.l.b16 %v498
        %v539 = vunpack.c.h.b16 %v498
        %v540 = vunpack.c.l.b16 %v499
        %v541 = vunpack.c.h.b16 %v499
        %v542 = vunpack.c.l.b16 %v500
        %v543 = vunpack.c.h.b16 %v500
        %v544 = vunpack.c.l.b16 %v501
        %v545 = vunpack.c.h.b16 %v501
        %v546 = vunpack.c.l.b16 %v502
        %v547 = vunpack.c.h.b16 %v502
        %v548 = vunpack.c.l.b16 %v503
        %v549 = vunpack.c.h.b16 %v503
        %v550 = vunpack.c.l.b16 %v504
        %v551 = vunpack.c.h.b16 %v504
        %v552 = vunpack.c.l.b16 %v505
        %v553 = vunpack.c.h.b16 %v505
        %v554 = vpack.c.b16 %v524, %v522
        %v555 = vpack.c.b16 %v525, %v523
        %v556 = vpack.c.b16 %v528, %v526
        %v557 = vpack.c.b16 %v529, %v527
        %v558 = vpack.c.b16 %v532, %v530
        %v559 = vpack.c.b16 %v533, %v531
        %v560 = vpack.c.b16 %v536, %v534
        %v561 = vpack.c.b16 %v537, %v535
        %v562 = vpack.c.b16 %v540, %v538
        %v563 = vpack.c.b16 %v541, %v539
        %v564 = vpack.c.b16 %v544, %v542
        %v565 = vpack.c.b16 %v545, %v543
        %v566 = vpack.c.b16 %v548, %v546
        %v567 = vpack.c.b16 %v549, %v547
        %v568 = vpack.c.b16 %v552, %v550
        %v569 = vpack.c.b16 %v553, %v551
        %586 = vmatpush.bf16.msra.mxu0 %v568
        %587 = vmatpush.bf16.msra.mxu0 %v566
        %588 = vmatpush.bf16.msra.mxu0 %v564
        %589 = vmatpush.bf16.msra.mxu0 %v562
        %590 = vmatpush.bf16.msra.mxu0 %v560
        %591 = vmatpush.bf16.msra.mxu0 %v558
        %592 = vmatpush.bf16.msra.mxu0 %v556
        %593 = vmatpush.bf16.msra.mxu0 %v554
        %594 = vmatmul.bf16.gmra.mxu0 %v489
        %v595 = vpop.f32.mrf.mxu0
        %v596 = vadd.f32 0.0, %v595
        %v597 = vpop.f32.mrf.mxu0
        %598 = vdwg.mxu0
        %599 = vmatpush.bf16.msra.mxu0 %v569
        %600 = vmatpush.bf16.msra.mxu0 %v567
        %601 = vmatpush.bf16.msra.mxu0 %v565
        %602 = vmatpush.bf16.msra.mxu0 %v563
        %603 = vmatpush.bf16.msra.mxu0 %v561
        %604 = vmatpush.bf16.msra.mxu0 %v559
        %605 = vmatpush.bf16.msra.mxu0 %v557
        %606 = vmatpush.bf16.msra.mxu0 %v555
        %607 = vmatmul.bf16.gmra.mxu0 %v489
        %v608 = vpop.f32.mrf.mxu0
        %v609 = vadd.f32 0.0, %v608
        %v610 = vpop.f32.mrf.mxu0
        %611 = vdwg.mxu0
        %612 = vst [vmem:[%s304] sm:$0xff] %v306
        %613 = vst [vmem:[%s304 + $0x8] sm:$0xff] %v307
        %614 = vst [vmem:[%s304 + $0x10] sm:$0xff] %v596
        %615 = vst [vmem:[%s304 + $0x18] sm:$0xff] %v609
        %s616 = sand.u32 %s142, 1
        %s617 = scalar_lea.sflag [#allocation4], %s616
        %s618 = sand.u32 %s142, 1
        %s619 = smul.addr %s618, 32
        %s620 = scalar_lea.vmem [#allocation11], %s619
        // Predicated region
        $region61: #{tpu_custom_call.1} parent=39 // pred_check
          %p621 = pneg %p152
        $region62: #{tpu_custom_call.1} parent=39 // pred_check_branch
          %623 = sbr.rel (%p621) target = $region64
        $region63: #{tpu_custom_call.1} parent=39 // pred_region
          %625 = vsyncadd %s617, 0
          %s626 = smul.addr %s24, 4
          %s627 = smul.addr %s626, 8
          %s628 = scalar_lea.hbm %s5, %s627
          %s629 = sshll.u32 %s620, 4
          %s630 = int_to_ptr.vmem [resolvable:$true] %s629
          %s631 = sshll.u32 %s628, 4
          %s632 = int_to_ptr.hbm [resolvable:$true] %s631
          %637 = dma.vmem_to_hbm [thread:$0]  %s630, 512, %s632, %s617, 256, 256, 16
        $region64: #{tpu_custom_call.1} parent=39 // pred_fallthru
          _
      $region40: #{tpu_custom_call.1} parent=5 // pred_fallthru
        _
      %p638 = scmp.le.s32.totalorder 2, %s19
      // Predicated region
      $region65: #{tpu_custom_call.1} parent=5 // pred_check
        %p639 = pneg %p638
      $region66: #{tpu_custom_call.1} parent=5 // pred_check_branch
        %641 = sbr.rel (%p639) target = $region68
      $region67: #{tpu_custom_call.1} parent=5 // pred_region
        %s642 = ssub.s32 %s19, 2
        // Predicated region
        $region69: #{tpu_custom_call.1} parent=67 // pred_check
          %p643 = pneg %p158
        $region70: #{tpu_custom_call.1} parent=67 // pred_check_branch
          %645 = sbr.rel (%p643) target = $region72
        $region71: #{tpu_custom_call.1} parent=67 // pred_region
          %s646 = sand.u32 %s143, 1
          %s647 = scalar_lea.sflag [#allocation4], %s646
          %s648 = sand.u32 %s143, 1
          %s649 = smul.addr %s648, 32
          %s650 = scalar_lea.vmem [#allocation11], %s649
          %652 = dma.done %s647, 512
        $region72: #{tpu_custom_call.1} parent=67 // pred_fallthru
          _
      $region68: #{tpu_custom_call.1} parent=5 // pred_fallthru
        _
    $region6: #{tpu_custom_call.1} parent=1 // loop_footer
      %s23 = sadd.s32 1, %s19
    $region7: #{tpu_custom_call.1} parent=1 // loop_footer_branch
      %18 = sbr.rel target = $region3
    $region8: #{tpu_custom_call.1} parent=1 // loop_exit
      _
    %653 = vsyncpa [#allocation3], 1
    %s654 = scalar_lea.sflag [#allocation3], 1
    %655 = vsyncpa %s654, 1
    %656 = vsyncpa [#allocation6], 1
    %657 = vsyncpa [#allocation9], 1
    %658 = vsyncpa [#allocation4], 1
    %s659 = scalar_lea.sflag [#allocation4], 1
    %660 = vsyncpa %s659, 1

</llo_original>
